<compile_context>
chip_gen: v6e
topology: v6e:2x2x1
jax: 0.10.0
libtpu: 0.0.40
codegen_flags: <defaults>
</compile_context>

<pallas_src>
import functools
import math

import jax
import jax.numpy as jnp
from jax import lax
from jax.experimental import pallas as pl
from jax.experimental.pallas import tpu as pltpu


def _ica_kernel(q_ref, k_ref, v_ref, wq_ref, wk_ref, wv_ref, wo_ref, o_ref,
                qproj_ref, out_pre_ref, row_sum_ref, *,
                num_heads, head_dim, kv_len, approx_recip):
    """One (batch, key-tile) grid step.

    q_ref:       (1, N, D)   query block (resident across key tiles)
    k_ref/v_ref: (1, TL, D)  key / value tile
    w*_ref:      (D, D)      pre-transposed projection weights (grid-resident)
    o_ref:       (1, N, D)   output block (written on the last key tile)
    qproj_ref:   (N, D)      cached projected queries (compute dtype)
    out_pre_ref: (N, D) f32  un-renormalized per-head outputs (accumulator)
    row_sum_ref: (N, H) f32  per-head row-renormalization sums (accumulator)
    """
    lt = pl.program_id(1)
    n_lt = pl.num_programs(1)
    f32 = jnp.float32
    cdt = qproj_ref.dtype

    # --- once per batch element: project queries, reset accumulators -------
    @pl.when(lt == 0)
    def _init():
        # attn_scale is already folded into wq in the wrapper.
        qproj_ref[...] = jnp.dot(q_ref[0], wq_ref[...],
                                 preferred_element_type=f32).astype(cdt)
        out_pre_ref[...] = jnp.zeros_like(out_pre_ref)
        row_sum_ref[...] = jnp.zeros_like(row_sum_ref)

    # --- full-width K/V projections for this key tile (max MXU fill) -------
    k_t = k_ref[0]                                               # (TL, D)
    v_t = v_ref[0]
    kg = jnp.dot(k_t, wk_ref[...], preferred_element_type=f32)   # (TL, D) f32
    vg = jnp.dot(v_t, wv_ref[...], preferred_element_type=f32)   # (TL, D) f32
    kg_c = kg.astype(cdt)
    qp = qproj_ref[...]                                          # (N, D) cdt

    tl = k_t.shape[0]
    ones_col = jnp.ones((tl, 1), f32)                            # hoisted

    for h in range(num_heads):
        hs = slice(h * head_dim, (h + 1) * head_dim)
        qh = qp[:, hs]                                           # (N, Dh)
        kh = kg_c[:, hs]                                         # (TL, Dh)

        # Scores produced transposed, (TL, N): the query-axis softmax stats
        # become lane reductions giving (TL, 1) vectors directly.
        s_t = lax.dot_general(kh, qh, (((1,), (1,)), ((), ())),
                              preferred_element_type=f32)        # (TL, N)
        m = jnp.max(s_t, axis=-1, keepdims=True)                 # (TL, 1)
        e = jnp.exp(s_t - m)                                     # (TL, N) f32
        col_inv = pl.reciprocal(jnp.sum(e, axis=-1, keepdims=True),
                                approx=approx_recip)             # (TL, 1)

        # Fold col_inv into V and append a ones column: one MXU call yields
        # both the partial head output and the row-renormalization sums.
        v_aug = jnp.concatenate([vg[:, hs], ones_col], axis=-1)  # (TL, Dh+1)
        v_aug = (v_aug * col_inv).astype(cdt)
        both = lax.dot_general(e.astype(cdt), v_aug,
                               (((0,), (0,)), ((), ())),
                               preferred_element_type=f32)       # (N, Dh+1)
        out_pre_ref[:, hs] += both[:, :head_dim]
        row_sum_ref[:, h:h + 1] += both[:, head_dim:head_dim + 1]

    # --- last key tile: row renormalization + fused output projection ------
    @pl.when(lt == n_lt - 1)
    def _finalize():
        eps = kv_len * 1e-10   # sum_l(attn + 1e-10) == sum_l attn + L * 1e-10
        for h in range(num_heads):
            hs = slice(h * head_dim, (h + 1) * head_dim)
            row_inv = pl.reciprocal(row_sum_ref[:, h:h + 1] + eps,
                                    approx=approx_recip)         # (N, 1)
            out_pre_ref[:, hs] = out_pre_ref[:, hs] * row_inv
        o_ref[0] = jnp.dot(out_pre_ref[...].astype(cdt), wo_ref[...],
                           preferred_element_type=f32).astype(o_ref.dtype)


def inverse_cross_attention_mh(q, k, v, wq, wk, wv, wo, *, num_heads,
                               block_l=None, compute_dtype=jnp.bfloat16,
                               approx_recip=True):
    """q: (B, N, D); k, v: (B, L, D); weights are PyTorch-style (D_out, D_in).

    Returns (B, N, D) float32, matching InverseCrossAttentionMH.forward()[0]
    with attn_mask=None, return_seg=False.
    """
    B, N, D = q.shape
    _, L, _ = k.shape
    assert D % num_heads == 0, "d_model must be divisible by num_heads"
    Dh = D // num_heads
    scale = D ** (-0.5)
    cdt = jnp.dtype(compute_dtype)

    # Key-length tile: largest nice candidate that divides L.  The softmax is
    # over the query axis, so it is exact per key tile; only the per-head row
    # sums and partial outputs accumulate across tiles.
    if block_l is None:
        block_l = L
        for cand in (1024, 512, 256, 128, 64, 32, 16, 8):
            if cand <= L and L % cand == 0:
                block_l = cand
                break
    assert L % block_l == 0, "block_l must divide the key length"
    n_lt = L // block_l

    # One-time weight re-layout outside the kernel: y = x @ W.T, and the
    # attn_scale on the projected queries is folded into Wq.
    wq_t = (wq.T * scale).astype(cdt)
    wk_t = wk.T.astype(cdt)
    wv_t = wv.T.astype(cdt)
    wo_t = wo.T.astype(cdt)
    q_c = q.astype(cdt)
    k_c = k.astype(cdt)
    v_c = v.astype(cdt)

    kernel = functools.partial(_ica_kernel, num_heads=num_heads, head_dim=Dh,
                               kv_len=L, approx_recip=approx_recip)

    q_spec = pl.BlockSpec((1, N, D), lambda b, t: (b, 0, 0))
    kv_spec = pl.BlockSpec((1, block_l, D), lambda b, t: (b, t, 0))
    w_spec = pl.BlockSpec((D, D), lambda b, t: (0, 0))      # grid-resident
    out_spec = pl.BlockSpec((1, N, D), lambda b, t: (b, 0, 0))

    # Scoped-VMEM budget: resident weights + blocks + scratch + transients.
    cbytes = cdt.itemsize
    vmem_est = (4 * D * D * cbytes * 2            # resident weights (2 bufs)
                + 2 * N * D * (cbytes + 4)        # q block + f32 output block
                + 4 * block_l * D * cbytes        # double-buffered k/v tiles
                + N * D * (cbytes + 4)            # qproj + out_pre scratch
                + N * max(num_heads, 128) * 4     # row_sum scratch (padded)
                + 4 * block_l * max(N, 128) * 4)  # transient scores / exp
    vmem_limit = int(min(max(2 * vmem_est, 32 << 20), 100 << 20))

    flops = B * (4 * D * D * (N + L) + 4 * N * L * D + 2 * N * L * num_heads)
    bytes_accessed = (cbytes * (B * N * D + 2 * B * L * D + 4 * D * D)
                      + 4 * B * N * D)
    cost = pl.CostEstimate(flops=flops,
                           transcendentals=B * num_heads * N * L,
                           bytes_accessed=bytes_accessed)

    return pl.pallas_call(
        kernel,
        out_shape=jax.ShapeDtypeStruct((B, N, D), jnp.float32),
        grid_spec=pltpu.PrefetchScalarGridSpec(
            num_scalar_prefetch=0,
            grid=(B, n_lt),
            in_specs=[q_spec, kv_spec, kv_spec, w_spec, w_spec, w_spec, w_spec],
            out_specs=out_spec,
            scratch_shapes=[pltpu.VMEM((N, D), cdt),           # projected q
                            pltpu.VMEM((N, D), jnp.float32),   # out_pre acc
                            pltpu.VMEM((N, num_heads), jnp.float32)],
        ),
        compiler_params=pltpu.CompilerParams(
            dimension_semantics=("parallel", "arbitrary"),
            vmem_limit_bytes=vmem_limit),
        cost_estimate=cost,
    )(q_c, k_c, v_c, wq_t, wk_t, wv_t, wo_t)


def _xavier_uniform(key, d_out, d_in):
    bound = math.sqrt(6.0 / (d_in + d_out))
    return jax.random.uniform(key, (d_out, d_in), jnp.float32, -bound, bound)


def _reference(q, k, v, wq, wk, wv, wo, *, num_heads):
    # Pure-JAX reference mirroring the PyTorch forward exactly.
    B, N, D = q.shape
    _, L, _ = k.shape
    Dh = D // num_heads
    scale = D ** (-0.5)

    def split(x, s):
        return x.reshape(B, s, num_heads, Dh).transpose(0, 2, 1, 3)

    qh = split(q @ wq.T, N) * scale
    kh = split(k @ wk.T, L)
    vh = split(v @ wv.T, L)
    attn = jnp.einsum("bhnd,bhld->bhnl", qh, kh)
    attn = jax.nn.softmax(attn, axis=-2)
    attn = attn / jnp.sum(attn + 1e-10, axis=-1, keepdims=True)
    out = jnp.einsum("bhnl,bhld->bhnd", attn, vh)
    out = out.transpose(0, 2, 1, 3).reshape(B, N, D)
    return out @ wo.T


if __name__ == "__main__":
    B, N, L, D, H = 2, 8, 16, 32, 4

    key = jax.random.PRNGKey(0)
    kq, kk, kv_, kwq, kwk, kwv, kwo = jax.random.split(key, 7)

    q = jax.random.normal(kq, (B, N, D), jnp.float32)
    k = jax.random.normal(kk, (B, L, D), jnp.float32)
    v = jax.random.normal(kv_, (B, L, D), jnp.float32)

    wq = _xavier_uniform(kwq, D, D)
    wk = _xavier_uniform(kwk, D, D)
    wv = _xavier_uniform(kwv, D, D)
    wo = _xavier_uniform(kwo, D, D)

    ref = _reference(q, k, v, wq, wk, wv, wo, num_heads=H)

    # Precise path (f32 MXU operands, exact reciprocals): tight check of the
    # folded-normalization math, with the key axis tiled (2 tiles of 8).
    out_f32 = inverse_cross_attention_mh(
        q, k, v, wq, wk, wv, wo, num_heads=H, block_l=8,
        compute_dtype=jnp.float32, approx_recip=False)
    out_f32 = jax.block_until_ready(out_f32)
    assert out_f32.shape == (B, N, D)
    assert jnp.allclose(out_f32, ref, atol=1e-4, rtol=1e-4), \
        "f32 kernel mismatch vs reference"

    # Fast path (bf16 MXU operands, EUP approx reciprocals).
    out_bf16 = inverse_cross_attention_mh(
        q, k, v, wq, wk, wv, wo, num_heads=H, block_l=8)
    out_bf16 = jax.block_until_ready(out_bf16)
    assert out_bf16.shape == (B, N, D)
    assert jnp.allclose(out_bf16, ref, atol=3e-2, rtol=3e-2), \
        "bf16 kernel mismatch vs reference"

    print("KERNEL_OK")
</pallas_src>

<mosaic_0001>
module attributes {stable_mosaic.version = 11 : i64} {
  func.func @_ica_kernel(%arg0: i32, %arg1: i32, %arg2: memref<1x8x32xf32, #tpu.memory_space<vmem>>, %arg3: memref<1x8x32xf32, #tpu.memory_space<vmem>>, %arg4: memref<1x8x32xf32, #tpu.memory_space<vmem>>, %arg5: memref<32x32xf32, #tpu.memory_space<vmem>>, %arg6: memref<32x32xf32, #tpu.memory_space<vmem>>, %arg7: memref<32x32xf32, #tpu.memory_space<vmem>>, %arg8: memref<32x32xf32, #tpu.memory_space<vmem>>, %arg9: memref<1x8x32xf32, #tpu.memory_space<vmem>>, %arg10: memref<8x32xf32, #tpu.memory_space<vmem>>, %arg11: memref<8x32xf32, #tpu.memory_space<vmem>>, %arg12: memref<8x4xf32, #tpu.memory_space<vmem>>) attributes {dimension_semantics = [#tpu.dimension_semantics<parallel>, #tpu.dimension_semantics<arbitrary>], iteration_bounds = array<i64: 2, 2>, scalar_prefetch = 0 : i64, scratch_operands = 3 : i64, tpu.core_type = #tpu.core_type<tc>, window_params = [{transform_indices = @transform_0, window_bounds = array<i64: 1, 8, 32>}, {transform_indices = @transform_1, window_bounds = array<i64: 1, 8, 32>}, {transform_indices = @transform_2, window_bounds = array<i64: 1, 8, 32>}, {pipeline_mode = #tpu.pipeline_mode<synchronous>, transform_indices = @transform_3, window_bounds = array<i64: 32, 32>}, {pipeline_mode = #tpu.pipeline_mode<synchronous>, transform_indices = @transform_4, window_bounds = array<i64: 32, 32>}, {pipeline_mode = #tpu.pipeline_mode<synchronous>, transform_indices = @transform_5, window_bounds = array<i64: 32, 32>}, {pipeline_mode = #tpu.pipeline_mode<synchronous>, transform_indices = @transform_6, window_bounds = array<i64: 32, 32>}, {transform_indices = @transform_7, window_bounds = array<i64: 1, 8, 32>}]} {
    %c0_i32 = arith.constant 0 : i32
    %0 = arith.cmpi eq, %arg1, %c0_i32 : i32
    %1 = arith.extui %0 : i1 to i32
    %c0_i32_0 = arith.constant 0 : i32
    %2 = arith.cmpi ne, %1, %c0_i32_0 : i32
    scf.if %2 {
      %c0_57 = arith.constant 0 : index
      %c0_58 = arith.constant 0 : index
      %c0_59 = arith.constant 0 : index
      %112 = vector.load %arg2[%c0_57, %c0_58, %c0_59] : memref<1x8x32xf32, #tpu.memory_space<vmem>>, vector<1x8x32xf32>
      %113 = vector.shape_cast %112 : vector<1x8x32xf32> to vector<8x32xf32>
      %c0_60 = arith.constant 0 : index
      %c0_61 = arith.constant 0 : index
      %114 = vector.load %arg5[%c0_60, %c0_61] : memref<32x32xf32, #tpu.memory_space<vmem>>, vector<32x32xf32>
      %cst_62 = arith.constant dense<0.000000e+00> : vector<8x32xf32>
      %115 = tpu.matmul %113, %114, %cst_62 {dimension_numbers = #tpu.dot_dimension_numbers<[1], [0], [0], [1], [0, 0, 1, 1], [], []>} : vector<8x32xf32>, vector<32x32xf32>, vector<8x32xf32> -> vector<8x32xf32>
      %c0_63 = arith.constant 0 : index
      %c0_64 = arith.constant 0 : index
      %116 = vector.load %arg10[%c0_63, %c0_64] : memref<8x32xf32, #tpu.memory_space<vmem>>, vector<8x32xf32>
      tpu.vector_store %arg10[%c0_63, %c0_64], %115 {strides = array<i32>} : memref<8x32xf32, #tpu.memory_space<vmem>>, vector<8x32xf32>,
      %cst_65 = arith.constant 0.000000e+00 : f32
      %117 = vector.broadcast %cst_65 : f32 to vector<8x32xf32>
      %c0_66 = arith.constant 0 : index
      %c0_67 = arith.constant 0 : index
      %118 = vector.load %arg11[%c0_66, %c0_67] : memref<8x32xf32, #tpu.memory_space<vmem>>, vector<8x32xf32>
      tpu.vector_store %arg11[%c0_66, %c0_67], %117 {strides = array<i32>} : memref<8x32xf32, #tpu.memory_space<vmem>>, vector<8x32xf32>,
      %cst_68 = arith.constant 0.000000e+00 : f32
      %119 = vector.broadcast %cst_68 : f32 to vector<8x4xf32>
      %c0_69 = arith.constant 0 : index
      %c0_70 = arith.constant 0 : index
      %120 = vector.load %arg12[%c0_69, %c0_70] : memref<8x4xf32, #tpu.memory_space<vmem>>, vector<8x4xf32>
      tpu.vector_store %arg12[%c0_69, %c0_70], %119 {strides = array<i32>} : memref<8x4xf32, #tpu.memory_space<vmem>>, vector<8x4xf32>,
    } else {
    }
    %c0 = arith.constant 0 : index
    %c0_1 = arith.constant 0 : index
    %c0_2 = arith.constant 0 : index
    %3 = vector.load %arg3[%c0, %c0_1, %c0_2] : memref<1x8x32xf32, #tpu.memory_space<vmem>>, vector<1x8x32xf32>
    %4 = vector.shape_cast %3 : vector<1x8x32xf32> to vector<8x32xf32>
    %c0_3 = arith.constant 0 : index
    %c0_4 = arith.constant 0 : index
    %c0_5 = arith.constant 0 : index
    %5 = vector.load %arg4[%c0_3, %c0_4, %c0_5] : memref<1x8x32xf32, #tpu.memory_space<vmem>>, vector<1x8x32xf32>
    %6 = vector.shape_cast %5 : vector<1x8x32xf32> to vector<8x32xf32>
    %c0_6 = arith.constant 0 : index
    %c0_7 = arith.constant 0 : index
    %7 = vector.load %arg6[%c0_6, %c0_7] : memref<32x32xf32, #tpu.memory_space<vmem>>, vector<32x32xf32>
    %cst = arith.constant dense<0.000000e+00> : vector<8x32xf32>
    %8 = tpu.matmul %4, %7, %cst {dimension_numbers = #tpu.dot_dimension_numbers<[1], [0], [0], [1], [0, 0, 1, 1], [], []>} : vector<8x32xf32>, vector<32x32xf32>, vector<8x32xf32> -> vector<8x32xf32>
    %c0_8 = arith.constant 0 : index
    %c0_9 = arith.constant 0 : index
    %9 = vector.load %arg7[%c0_8, %c0_9] : memref<32x32xf32, #tpu.memory_space<vmem>>, vector<32x32xf32>
    %cst_10 = arith.constant dense<0.000000e+00> : vector<8x32xf32>
    %10 = tpu.matmul %6, %9, %cst_10 {dimension_numbers = #tpu.dot_dimension_numbers<[1], [0], [0], [1], [0, 0, 1, 1], [], []>} : vector<8x32xf32>, vector<32x32xf32>, vector<8x32xf32> -> vector<8x32xf32>
    %c0_11 = arith.constant 0 : index
    %c0_12 = arith.constant 0 : index
    %11 = vector.load %arg10[%c0_11, %c0_12] : memref<8x32xf32, #tpu.memory_space<vmem>>, vector<8x32xf32>
    %cst_13 = arith.constant 1.000000e+00 : f32
    %12 = vector.broadcast %cst_13 : f32 to vector<8x1xf32>
    %13 = vector.extract_strided_slice %11 {offsets = [0, 0], sizes = [8, 8], strides = [1, 1]} : vector<8x32xf32> to vector<8x8xf32>
    %14 = vector.extract_strided_slice %8 {offsets = [0, 0], sizes = [8, 8], strides = [1, 1]} : vector<8x32xf32> to vector<8x8xf32>
    %cst_14 = arith.constant dense<0.000000e+00> : vector<8x8xf32>
    %15 = tpu.matmul %14, %13, %cst_14 {dimension_numbers = #tpu.dot_dimension_numbers<[1], [1], [0], [0], [0, 0, 1, 0], [], []>} : vector<8x8xf32>, vector<8x8xf32>, vector<8x8xf32> -> vector<8x8xf32>
    %cst_15 = arith.constant dense<0xFF800000> : vector<8xf32>
    %16 = vector.multi_reduction <maximumf>, %15, %cst_15 [1] : vector<8x8xf32> to vector<8xf32>
    %17 = vector.shape_cast %16 : vector<8xf32> to vector<8x1xf32>
    %18 = vector.broadcast %17 : vector<8x1xf32> to vector<8x8xf32>
    %19 = arith.subf %15, %18 : vector<8x8xf32>
    %20 = math.exp %19 : vector<8x8xf32>
    %cst_16 = arith.constant dense<0.000000e+00> : vector<8xf32>
    %21 = vector.multi_reduction <add>, %20, %cst_16 [1] : vector<8x8xf32> to vector<8xf32>
    %22 = vector.shape_cast %21 : vector<8xf32> to vector<8x1xf32>
    %23 = tpu.reciprocal %22 : vector<8x1xf32> -> vector<8x1xf32>
    %24 = vector.extract_strided_slice %10 {offsets = [0, 0], sizes = [8, 8], strides = [1, 1]} : vector<8x32xf32> to vector<8x8xf32>
    %25 = tpu.concatenate %24, %12 in 1 : vector<8x8xf32>, vector<8x1xf32> -> vector<8x9xf32>
    %26 = vector.broadcast %23 : vector<8x1xf32> to vector<8x9xf32>
    %27 = arith.mulf %25, %26 : vector<8x9xf32>
    %cst_17 = arith.constant dense<0.000000e+00> : vector<8x9xf32>
    %28 = tpu.matmul %20, %27, %cst_17 {dimension_numbers = #tpu.dot_dimension_numbers<[0], [0], [1], [1], [0, 1, 1, 1], [], []>} : vector<8x8xf32>, vector<8x9xf32>, vector<8x9xf32> -> vector<8x9xf32>
    %c0_18 = arith.constant 0 : index
    %c0_19 = arith.constant 0 : index
    %29 = vector.load %arg11[%c0_18, %c0_19] : memref<8x32xf32, #tpu.memory_space<vmem>>, vector<8x8xf32>
    %30 = vector.extract_strided_slice %28 {offsets = [0, 0], sizes = [8, 8], strides = [1, 1]} : vector<8x9xf32> to vector<8x8xf32>
    %31 = arith.addf %29, %30 : vector<8x8xf32>
    %c0_20 = arith.constant 0 : index
    %c0_21 = arith.constant 0 : index
    %32 = vector.load %arg11[%c0_20, %c0_21] : memref<8x32xf32, #tpu.memory_space<vmem>>, vector<8x8xf32>
    tpu.vector_store %arg11[%c0_20, %c0_21], %31 {strides = array<i32>} : memref<8x32xf32, #tpu.memory_space<vmem>>, vector<8x8xf32>,
    %c0_22 = arith.constant 0 : index
    %c0_23 = arith.constant 0 : index
    %33 = vector.load %arg12[%c0_22, %c0_23] : memref<8x4xf32, #tpu.memory_space<vmem>>, vector<8x1xf32>
    %34 = vector.extract_strided_slice %28 {offsets = [0, 8], sizes = [8, 1], strides = [1, 1]} : vector<8x9xf32> to vector<8x1xf32>
    %35 = arith.addf %33, %34 : vector<8x1xf32>
    %c0_24 = arith.constant 0 : index
    %c0_25 = arith.constant 0 : index
    %36 = vector.load %arg12[%c0_24, %c0_25] : memref<8x4xf32, #tpu.memory_space<vmem>>, vector<8x1xf32>
    tpu.vector_store %arg12[%c0_24, %c0_25], %35 {strides = array<i32>} : memref<8x4xf32, #tpu.memory_space<vmem>>, vector<8x1xf32>,
    %37 = vector.extract_strided_slice %11 {offsets = [0, 8], sizes = [8, 8], strides = [1, 1]} : vector<8x32xf32> to vector<8x8xf32>
    %38 = vector.extract_strided_slice %8 {offsets = [0, 8], sizes = [8, 8], strides = [1, 1]} : vector<8x32xf32> to vector<8x8xf32>
    %cst_26 = arith.constant dense<0.000000e+00> : vector<8x8xf32>
    %39 = tpu.matmul %38, %37, %cst_26 {dimension_numbers = #tpu.dot_dimension_numbers<[1], [1], [0], [0], [0, 0, 1, 0], [], []>} : vector<8x8xf32>, vector<8x8xf32>, vector<8x8xf32> -> vector<8x8xf32>
    %cst_27 = arith.constant dense<0xFF800000> : vector<8xf32>
    %40 = vector.multi_reduction <maximumf>, %39, %cst_27 [1] : vector<8x8xf32> to vector<8xf32>
    %41 = vector.shape_cast %40 : vector<8xf32> to vector<8x1xf32>
    %42 = vector.broadcast %41 : vector<8x1xf32> to vector<8x8xf32>
    %43 = arith.subf %39, %42 : vector<8x8xf32>
    %44 = math.exp %43 : vector<8x8xf32>
    %cst_28 = arith.constant dense<0.000000e+00> : vector<8xf32>
    %45 = vector.multi_reduction <add>, %44, %cst_28 [1] : vector<8x8xf32> to vector<8xf32>
    %46 = vector.shape_cast %45 : vector<8xf32> to vector<8x1xf32>
    %47 = tpu.reciprocal %46 : vector<8x1xf32> -> vector<8x1xf32>
    %48 = vector.extract_strided_slice %10 {offsets = [0, 8], sizes = [8, 8], strides = [1, 1]} : vector<8x32xf32> to vector<8x8xf32>
    %49 = tpu.concatenate %48, %12 in 1 : vector<8x8xf32>, vector<8x1xf32> -> vector<8x9xf32>
    %50 = vector.broadcast %47 : vector<8x1xf32> to vector<8x9xf32>
    %51 = arith.mulf %49, %50 : vector<8x9xf32>
    %cst_29 = arith.constant dense<0.000000e+00> : vector<8x9xf32>
    %52 = tpu.matmul %44, %51, %cst_29 {dimension_numbers = #tpu.dot_dimension_numbers<[0], [0], [1], [1], [0, 1, 1, 1], [], []>} : vector<8x8xf32>, vector<8x9xf32>, vector<8x9xf32> -> vector<8x9xf32>
    %c0_30 = arith.constant 0 : index
    %c8 = arith.constant 8 : index
    %53 = vector.load %arg11[%c0_30, %c8] : memref<8x32xf32, #tpu.memory_space<vmem>>, vector<8x8xf32>
    %54 = vector.extract_strided_slice %52 {offsets = [0, 0], sizes = [8, 8], strides = [1, 1]} : vector<8x9xf32> to vector<8x8xf32>
    %55 = arith.addf %53, %54 : vector<8x8xf32>
    %c0_31 = arith.constant 0 : index
    %c8_32 = arith.constant 8 : index
    %56 = vector.load %arg11[%c0_31, %c8_32] : memref<8x32xf32, #tpu.memory_space<vmem>>, vector<8x8xf32>
    tpu.vector_store %arg11[%c0_31, %c8_32], %55 {strides = array<i32>} : memref<8x32xf32, #tpu.memory_space<vmem>>, vector<8x8xf32>,
    %c0_33 = arith.constant 0 : index
    %c1 = arith.constant 1 : index
    %57 = vector.load %arg12[%c0_33, %c1] : memref<8x4xf32, #tpu.memory_space<vmem>>, vector<8x1xf32>
    %58 = vector.extract_strided_slice %52 {offsets = [0, 8], sizes = [8, 1], strides = [1, 1]} : vector<8x9xf32> to vector<8x1xf32>
    %59 = arith.addf %57, %58 : vector<8x1xf32>
    %c0_34 = arith.constant 0 : index
    %c1_35 = arith.constant 1 : index
    %60 = vector.load %arg12[%c0_34, %c1_35] : memref<8x4xf32, #tpu.memory_space<vmem>>, vector<8x1xf32>
    tpu.vector_store %arg12[%c0_34, %c1_35], %59 {strides = array<i32>} : memref<8x4xf32, #tpu.memory_space<vmem>>, vector<8x1xf32>,
    %61 = vector.extract_strided_slice %11 {offsets = [0, 16], sizes = [8, 8], strides = [1, 1]} : vector<8x32xf32> to vector<8x8xf32>
    %62 = vector.extract_strided_slice %8 {offsets = [0, 16], sizes = [8, 8], strides = [1, 1]} : vector<8x32xf32> to vector<8x8xf32>
    %cst_36 = arith.constant dense<0.000000e+00> : vector<8x8xf32>
    %63 = tpu.matmul %62, %61, %cst_36 {dimension_numbers = #tpu.dot_dimension_numbers<[1], [1], [0], [0], [0, 0, 1, 0], [], []>} : vector<8x8xf32>, vector<8x8xf32>, vector<8x8xf32> -> vector<8x8xf32>
    %cst_37 = arith.constant dense<0xFF800000> : vector<8xf32>
    %64 = vector.multi_reduction <maximumf>, %63, %cst_37 [1] : vector<8x8xf32> to vector<8xf32>
    %65 = vector.shape_cast %64 : vector<8xf32> to vector<8x1xf32>
    %66 = vector.broadcast %65 : vector<8x1xf32> to vector<8x8xf32>
    %67 = arith.subf %63, %66 : vector<8x8xf32>
    %68 = math.exp %67 : vector<8x8xf32>
    %cst_38 = arith.constant dense<0.000000e+00> : vector<8xf32>
    %69 = vector.multi_reduction <add>, %68, %cst_38 [1] : vector<8x8xf32> to vector<8xf32>
    %70 = vector.shape_cast %69 : vector<8xf32> to vector<8x1xf32>
    %71 = tpu.reciprocal %70 : vector<8x1xf32> -> vector<8x1xf32>
    %72 = vector.extract_strided_slice %10 {offsets = [0, 16], sizes = [8, 8], strides = [1, 1]} : vector<8x32xf32> to vector<8x8xf32>
    %73 = tpu.concatenate %72, %12 in 1 : vector<8x8xf32>, vector<8x1xf32> -> vector<8x9xf32>
    %74 = vector.broadcast %71 : vector<8x1xf32> to vector<8x9xf32>
    %75 = arith.mulf %73, %74 : vector<8x9xf32>
    %cst_39 = arith.constant dense<0.000000e+00> : vector<8x9xf32>
    %76 = tpu.matmul %68, %75, %cst_39 {dimension_numbers = #tpu.dot_dimension_numbers<[0], [0], [1], [1], [0, 1, 1, 1], [], []>} : vector<8x8xf32>, vector<8x9xf32>, vector<8x9xf32> -> vector<8x9xf32>
    %c0_40 = arith.constant 0 : index
    %c16 = arith.constant 16 : index
    %77 = vector.load %arg11[%c0_40, %c16] : memref<8x32xf32, #tpu.memory_space<vmem>>, vector<8x8xf32>
    %78 = vector.extract_strided_slice %76 {offsets = [0, 0], sizes = [8, 8], strides = [1, 1]} : vector<8x9xf32> to vector<8x8xf32>
    %79 = arith.addf %77, %78 : vector<8x8xf32>
    %c0_41 = arith.constant 0 : index
    %c16_42 = arith.constant 16 : index
    %80 = vector.load %arg11[%c0_41, %c16_42] : memref<8x32xf32, #tpu.memory_space<vmem>>, vector<8x8xf32>
    tpu.vector_store %arg11[%c0_41, %c16_42], %79 {strides = array<i32>} : memref<8x32xf32, #tpu.memory_space<vmem>>, vector<8x8xf32>,
    %c0_43 = arith.constant 0 : index
    %c2 = arith.constant 2 : index
    %81 = vector.load %arg12[%c0_43, %c2] : memref<8x4xf32, #tpu.memory_space<vmem>>, vector<8x1xf32>
    %82 = vector.extract_strided_slice %76 {offsets = [0, 8], sizes = [8, 1], strides = [1, 1]} : vector<8x9xf32> to vector<8x1xf32>
    %83 = arith.addf %81, %82 : vector<8x1xf32>
    %c0_44 = arith.constant 0 : index
    %c2_45 = arith.constant 2 : index
    %84 = vector.load %arg12[%c0_44, %c2_45] : memref<8x4xf32, #tpu.memory_space<vmem>>, vector<8x1xf32>
    tpu.vector_store %arg12[%c0_44, %c2_45], %83 {strides = array<i32>} : memref<8x4xf32, #tpu.memory_space<vmem>>, vector<8x1xf32>,
    %85 = vector.extract_strided_slice %11 {offsets = [0, 24], sizes = [8, 8], strides = [1, 1]} : vector<8x32xf32> to vector<8x8xf32>
    %86 = vector.extract_strided_slice %8 {offsets = [0, 24], sizes = [8, 8], strides = [1, 1]} : vector<8x32xf32> to vector<8x8xf32>
    %cst_46 = arith.constant dense<0.000000e+00> : vector<8x8xf32>
    %87 = tpu.matmul %86, %85, %cst_46 {dimension_numbers = #tpu.dot_dimension_numbers<[1], [1], [0], [0], [0, 0, 1, 0], [], []>} : vector<8x8xf32>, vector<8x8xf32>, vector<8x8xf32> -> vector<8x8xf32>
    %cst_47 = arith.constant dense<0xFF800000> : vector<8xf32>
    %88 = vector.multi_reduction <maximumf>, %87, %cst_47 [1] : vector<8x8xf32> to vector<8xf32>
    %89 = vector.shape_cast %88 : vector<8xf32> to vector<8x1xf32>
    %90 = vector.broadcast %89 : vector<8x1xf32> to vector<8x8xf32>
    %91 = arith.subf %87, %90 : vector<8x8xf32>
    %92 = math.exp %91 : vector<8x8xf32>
    %cst_48 = arith.constant dense<0.000000e+00> : vector<8xf32>
    %93 = vector.multi_reduction <add>, %92, %cst_48 [1] : vector<8x8xf32> to vector<8xf32>
    %94 = vector.shape_cast %93 : vector<8xf32> to vector<8x1xf32>
    %95 = tpu.reciprocal %94 : vector<8x1xf32> -> vector<8x1xf32>
    %96 = vector.extract_strided_slice %10 {offsets = [0, 24], sizes = [8, 8], strides = [1, 1]} : vector<8x32xf32> to vector<8x8xf32>
    %97 = tpu.concatenate %96, %12 in 1 : vector<8x8xf32>, vector<8x1xf32> -> vector<8x9xf32>
    %98 = vector.broadcast %95 : vector<8x1xf32> to vector<8x9xf32>
    %99 = arith.mulf %97, %98 : vector<8x9xf32>
    %cst_49 = arith.constant dense<0.000000e+00> : vector<8x9xf32>
    %100 = tpu.matmul %92, %99, %cst_49 {dimension_numbers = #tpu.dot_dimension_numbers<[0], [0], [1], [1], [0, 1, 1, 1], [], []>} : vector<8x8xf32>, vector<8x9xf32>, vector<8x9xf32> -> vector<8x9xf32>
    %c0_50 = arith.constant 0 : index
    %c24 = arith.constant 24 : index
    %101 = vector.load %arg11[%c0_50, %c24] : memref<8x32xf32, #tpu.memory_space<vmem>>, vector<8x8xf32>
    %102 = vector.extract_strided_slice %100 {offsets = [0, 0], sizes = [8, 8], strides = [1, 1]} : vector<8x9xf32> to vector<8x8xf32>
    %103 = arith.addf %101, %102 : vector<8x8xf32>
    %c0_51 = arith.constant 0 : index
    %c24_52 = arith.constant 24 : index
    %104 = vector.load %arg11[%c0_51, %c24_52] : memref<8x32xf32, #tpu.memory_space<vmem>>, vector<8x8xf32>
    tpu.vector_store %arg11[%c0_51, %c24_52], %103 {strides = array<i32>} : memref<8x32xf32, #tpu.memory_space<vmem>>, vector<8x8xf32>,
    %c0_53 = arith.constant 0 : index
    %c3 = arith.constant 3 : index
    %105 = vector.load %arg12[%c0_53, %c3] : memref<8x4xf32, #tpu.memory_space<vmem>>, vector<8x1xf32>
    %106 = vector.extract_strided_slice %100 {offsets = [0, 8], sizes = [8, 1], strides = [1, 1]} : vector<8x9xf32> to vector<8x1xf32>
    %107 = arith.addf %105, %106 : vector<8x1xf32>
    %c0_54 = arith.constant 0 : index
    %c3_55 = arith.constant 3 : index
    %108 = vector.load %arg12[%c0_54, %c3_55] : memref<8x4xf32, #tpu.memory_space<vmem>>, vector<8x1xf32>
    tpu.vector_store %arg12[%c0_54, %c3_55], %107 {strides = array<i32>} : memref<8x4xf32, #tpu.memory_space<vmem>>, vector<8x1xf32>,
    %c1_i32 = arith.constant 1 : i32
    %109 = arith.cmpi eq, %arg1, %c1_i32 : i32
    %110 = arith.extui %109 : i1 to i32
    %c0_i32_56 = arith.constant 0 : i32
    %111 = arith.cmpi ne, %110, %c0_i32_56 : i32
    scf.if %111 {
      %c0_57 = arith.constant 0 : index
      %c0_58 = arith.constant 0 : index
      %112 = vector.load %arg12[%c0_57, %c0_58] : memref<8x4xf32, #tpu.memory_space<vmem>>, vector<8x1xf32>
      %cst_59 = arith.constant 1.600000e-09 : f32
      %113 = vector.broadcast %cst_59 : f32 to vector<8x1xf32>
      %114 = arith.addf %112, %113 : vector<8x1xf32>
      %115 = tpu.reciprocal %114 : vector<8x1xf32> -> vector<8x1xf32>
      %c0_60 = arith.constant 0 : index
      %c0_61 = arith.constant 0 : index
      %116 = vector.load %arg11[%c0_60, %c0_61] : memref<8x32xf32, #tpu.memory_space<vmem>>, vector<8x8xf32>
      %117 = vector.broadcast %115 : vector<8x1xf32> to vector<8x8xf32>
      %118 = arith.mulf %116, %117 : vector<8x8xf32>
      %c0_62 = arith.constant 0 : index
      %c0_63 = arith.constant 0 : index
      %119 = vector.load %arg11[%c0_62, %c0_63] : memref<8x32xf32, #tpu.memory_space<vmem>>, vector<8x8xf32>
      tpu.vector_store %arg11[%c0_62, %c0_63], %118 {strides = array<i32>} : memref<8x32xf32, #tpu.memory_space<vmem>>, vector<8x8xf32>,
      %c0_64 = arith.constant 0 : index
      %c1_65 = arith.constant 1 : index
      %120 = vector.load %arg12[%c0_64, %c1_65] : memref<8x4xf32, #tpu.memory_space<vmem>>, vector<8x1xf32>
      %cst_66 = arith.constant 1.600000e-09 : f32
      %121 = vector.broadcast %cst_66 : f32 to vector<8x1xf32>
      %122 = arith.addf %120, %121 : vector<8x1xf32>
      %123 = tpu.reciprocal %122 : vector<8x1xf32> -> vector<8x1xf32>
      %c0_67 = arith.constant 0 : index
      %c8_68 = arith.constant 8 : index
      %124 = vector.load %arg11[%c0_67, %c8_68] : memref<8x32xf32, #tpu.memory_space<vmem>>, vector<8x8xf32>
      %125 = vector.broadcast %123 : vector<8x1xf32> to vector<8x8xf32>
      %126 = arith.mulf %124, %125 : vector<8x8xf32>
      %c0_69 = arith.constant 0 : index
      %c8_70 = arith.constant 8 : index
      %127 = vector.load %arg11[%c0_69, %c8_70] : memref<8x32xf32, #tpu.memory_space<vmem>>, vector<8x8xf32>
      tpu.vector_store %arg11[%c0_69, %c8_70], %126 {strides = array<i32>} : memref<8x32xf32, #tpu.memory_space<vmem>>, vector<8x8xf32>,
      %c0_71 = arith.constant 0 : index
      %c2_72 = arith.constant 2 : index
      %128 = vector.load %arg12[%c0_71, %c2_72] : memref<8x4xf32, #tpu.memory_space<vmem>>, vector<8x1xf32>
      %cst_73 = arith.constant 1.600000e-09 : f32
      %129 = vector.broadcast %cst_73 : f32 to vector<8x1xf32>
      %130 = arith.addf %128, %129 : vector<8x1xf32>
      %131 = tpu.reciprocal %130 : vector<8x1xf32> -> vector<8x1xf32>
      %c0_74 = arith.constant 0 : index
      %c16_75 = arith.constant 16 : index
      %132 = vector.load %arg11[%c0_74, %c16_75] : memref<8x32xf32, #tpu.memory_space<vmem>>, vector<8x8xf32>
      %133 = vector.broadcast %131 : vector<8x1xf32> to vector<8x8xf32>
      %134 = arith.mulf %132, %133 : vector<8x8xf32>
      %c0_76 = arith.constant 0 : index
      %c16_77 = arith.constant 16 : index
      %135 = vector.load %arg11[%c0_76, %c16_77] : memref<8x32xf32, #tpu.memory_space<vmem>>, vector<8x8xf32>
      tpu.vector_store %arg11[%c0_76, %c16_77], %134 {strides = array<i32>} : memref<8x32xf32, #tpu.memory_space<vmem>>, vector<8x8xf32>,
      %c0_78 = arith.constant 0 : index
      %c3_79 = arith.constant 3 : index
      %136 = vector.load %arg12[%c0_78, %c3_79] : memref<8x4xf32, #tpu.memory_space<vmem>>, vector<8x1xf32>
      %cst_80 = arith.constant 1.600000e-09 : f32
      %137 = vector.broadcast %cst_80 : f32 to vector<8x1xf32>
      %138 = arith.addf %136, %137 : vector<8x1xf32>
      %139 = tpu.reciprocal %138 : vector<8x1xf32> -> vector<8x1xf32>
      %c0_81 = arith.constant 0 : index
      %c24_82 = arith.constant 24 : index
      %140 = vector.load %arg11[%c0_81, %c24_82] : memref<8x32xf32, #tpu.memory_space<vmem>>, vector<8x8xf32>
      %141 = vector.broadcast %139 : vector<8x1xf32> to vector<8x8xf32>
      %142 = arith.mulf %140, %141 : vector<8x8xf32>
      %c0_83 = arith.constant 0 : index
      %c24_84 = arith.constant 24 : index
      %143 = vector.load %arg11[%c0_83, %c24_84] : memref<8x32xf32, #tpu.memory_space<vmem>>, vector<8x8xf32>
      tpu.vector_store %arg11[%c0_83, %c24_84], %142 {strides = array<i32>} : memref<8x32xf32, #tpu.memory_space<vmem>>, vector<8x8xf32>,
      %c0_85 = arith.constant 0 : index
      %c0_86 = arith.constant 0 : index
      %144 = vector.load %arg11[%c0_85, %c0_86] : memref<8x32xf32, #tpu.memory_space<vmem>>, vector<8x32xf32>
      %c0_87 = arith.constant 0 : index
      %c0_88 = arith.constant 0 : index
      %145 = vector.load %arg8[%c0_87, %c0_88] : memref<32x32xf32, #tpu.memory_space<vmem>>, vector<32x32xf32>
      %cst_89 = arith.constant dense<0.000000e+00> : vector<8x32xf32>
      %146 = tpu.matmul %144, %145, %cst_89 {dimension_numbers = #tpu.dot_dimension_numbers<[1], [0], [0], [1], [0, 0, 1, 1], [], []>} : vector<8x32xf32>, vector<32x32xf32>, vector<8x32xf32> -> vector<8x32xf32>
      %c0_90 = arith.constant 0 : index
      %c0_91 = arith.constant 0 : index
      %c0_92 = arith.constant 0 : index
      %147 = vector.load %arg9[%c0_90, %c0_91, %c0_92] : memref<1x8x32xf32, #tpu.memory_space<vmem>>, vector<1x8x32xf32>
      %148 = vector.shape_cast %147 : vector<1x8x32xf32> to vector<8x32xf32>
      %149 = vector.shape_cast %146 : vector<8x32xf32> to vector<1x8x32xf32>
      tpu.vector_store %arg9[%c0_90, %c0_91, %c0_92], %149 {strides = array<i32>} : memref<1x8x32xf32, #tpu.memory_space<vmem>>, vector<1x8x32xf32>,
    } else {
    }
    return
  }
  func.func @transform_0(%arg0: i32, %arg1: i32) -> (i32, i32, i32) {
    %c0_i32 = arith.constant 0 : i32
    %c0_i32_0 = arith.constant 0 : i32
    %c0_i32_1 = arith.constant 0 : i32
    return %arg0, %c0_i32, %c0_i32_0 : i32, i32, i32
  }
  func.func @transform_1(%arg0: i32, %arg1: i32) -> (i32, i32, i32) {
    %c0_i32 = arith.constant 0 : i32
    %c0_i32_0 = arith.constant 0 : i32
    return %arg0, %arg1, %c0_i32 : i32, i32, i32
  }
  func.func @transform_2(%arg0: i32, %arg1: i32) -> (i32, i32, i32) {
    %c0_i32 = arith.constant 0 : i32
    %c0_i32_0 = arith.constant 0 : i32
    return %arg0, %arg1, %c0_i32 : i32, i32, i32
  }
  func.func @transform_3(%arg0: i32, %arg1: i32) -> (i32, i32) {
    %c0_i32 = arith.constant 0 : i32
    %c0_i32_0 = arith.constant 0 : i32
    %c0_i32_1 = arith.constant 0 : i32
    return %c0_i32, %c0_i32_0 : i32, i32
  }
  func.func @transform_4(%arg0: i32, %arg1: i32) -> (i32, i32) {
    %c0_i32 = arith.constant 0 : i32
    %c0_i32_0 = arith.constant 0 : i32
    %c0_i32_1 = arith.constant 0 : i32
    return %c0_i32, %c0_i32_0 : i32, i32
  }
  func.func @transform_5(%arg0: i32, %arg1: i32) -> (i32, i32) {
    %c0_i32 = arith.constant 0 : i32
    %c0_i32_0 = arith.constant 0 : i32
    %c0_i32_1 = arith.constant 0 : i32
    return %c0_i32, %c0_i32_0 : i32, i32
  }
  func.func @transform_6(%arg0: i32, %arg1: i32) -> (i32, i32) {
    %c0_i32 = arith.constant 0 : i32
    %c0_i32_0 = arith.constant 0 : i32
    %c0_i32_1 = arith.constant 0 : i32
    return %c0_i32, %c0_i32_0 : i32, i32
  }
  func.func @transform_7(%arg0: i32, %arg1: i32) -> (i32, i32, i32) {
    %c0_i32 = arith.constant 0 : i32
    %c0_i32_0 = arith.constant 0 : i32
    %c0_i32_1 = arith.constant 0 : i32
    return %arg0, %c0_i32, %c0_i32_0 : i32, i32, i32
  }
}

</mosaic_0001>

<llo_original>
// kernel: tpu_custom_call.1
$region0: #{tpu_custom_call.1}
  #allocation0 [shape = 'u32[]', space=smem, size = 0x4, offset = 0x4, fixed_abs, tag = 'smem constant byte address 0x4 - core index']
  #allocation1 [shape = 'u32[144,128]{1,0:T(1,128)}', space=vmem, size = 0x12000, scoped, tag = 'internal scratch']
  #allocation2 [shape = 'f32[8,32]{1,0:T(8,128)}', space=vmem, size = 0x1000, scoped, tag = 'scratch operand']
  #allocation3 [shape = 'f32[8,32]{1,0:T(8,128)}', space=vmem, size = 0x1000, scoped, tag = 'scratch operand']
  #allocation4 [shape = 'f32[8,4]{1,0:T(8,128)}', space=vmem, size = 0x1000, scoped, tag = 'scratch operand']
  %s0 = inlined_call_operand.hbm [shape: f32[2,8,32], index: 0, kind: input, shape index: {}]
  %s1 = inlined_call_operand.hbm [shape: f32[2,16,32], index: 1, kind: input, shape index: {}]
  %s2 = inlined_call_operand.hbm [shape: f32[2,16,32], index: 2, kind: input, shape index: {}]
  %s3 = inlined_call_operand.hbm [shape: f32[32,32], index: 3, kind: input, shape index: {}]
  %s4 = inlined_call_operand.hbm [shape: f32[32,32], index: 4, kind: input, shape index: {}]
  %s5 = inlined_call_operand.hbm [shape: f32[32,32], index: 5, kind: input, shape index: {}]
  %s6 = inlined_call_operand.hbm [shape: f32[32,32], index: 6, kind: input, shape index: {}]
  %s7 = inlined_call_operand.hbm [shape: f32[2,8,32], index: 7, kind: output, shape index: {}]
  %s8 = sld [smem:[#allocation0]]
  $region97: #{tpu_custom_call.1} parent=0
    _
  %s10 = ssub.s32 1, %s8
  %s11 = scalar_select 0, %s10, %s8
  $region1: #{tpu_custom_call.1} parent=0
    #allocation5 [shape = 'u8[8192]{0}', space=vmem, size = 0x2000, scoped, tag = 'input window, operand 0']
    #allocation6 [shape = 's32[2]{0}', space=sflag, size = 0x8, scoped, tag = 'scoped memory for tpu_custom_call.1']
    #allocation7 [shape = 's32[2]{0}', space=sflag, size = 0x8, scoped, tag = 'scoped memory for tpu_custom_call.1']
    #allocation8 [shape = 'u8[8192]{0}', space=vmem, size = 0x2000, scoped, tag = 'input window, operand 1']
    #allocation9 [shape = 's32[2]{0}', space=sflag, size = 0x8, scoped, tag = 'scoped memory for tpu_custom_call.1']
    #allocation10 [shape = 'u8[8192]{0}', space=vmem, size = 0x2000, scoped, tag = 'input window, operand 2']
    #allocation11 [shape = 'u8[16384]{0}', space=vmem, size = 0x4000, scoped, tag = 'input window, operand 3, single buffered']
    #allocation12 [shape = 's32[1]{0}', space=sflag, size = 0x4, scoped, tag = 'scoped memory for tpu_custom_call.1']
    #allocation13 [shape = 'u8[16384]{0}', space=vmem, size = 0x4000, scoped, tag = 'input window, operand 4, single buffered']
    #allocation14 [shape = 'u8[16384]{0}', space=vmem, size = 0x4000, scoped, tag = 'input window, operand 5, single buffered']
    #allocation15 [shape = 's32[1]{0}', space=sflag, size = 0x4, scoped, tag = 'scoped memory for tpu_custom_call.1']
    #allocation16 [shape = 'u8[16384]{0}', space=vmem, size = 0x4000, scoped, tag = 'input window, operand 6, single buffered']
    #allocation17 [shape = 'u8[8192]{0}', space=vmem, size = 0x2000, scoped, tag = 'output window, operand 0']
    %12 = vsyncpa [#allocation6], 0
    %s13 = scalar_lea.sflag [#allocation6], 1
    %14 = vsyncpa %s13, 0
    %15 = vsyncpa [#allocation9], 0
    %s16 = scalar_lea.sflag [#allocation9], 1
    %17 = vsyncpa %s16, 0
    %18 = vsyncpa [#allocation12], 0
    %19 = vsyncpa [#allocation15], 0
    %20 = vsyncpa [#allocation7], 0
    %s21 = scalar_lea.sflag [#allocation7], 1
    %22 = vsyncpa %s21, 0
    loop: start=0, step=1, limit=6
    $region2: #{tpu_custom_call.1} parent=1 // loop_pre_header
      _
    $region3: #{tpu_custom_call.1} parent=1 // loop_header
      %s24 = sphi 0, %s28
      %p25 = scmp.ge.s32.totalorder %s24, 6
      %s31 = sphi 0, %s43
      %s32 = sphi 0, %s39
      %s33 = sphi 0, %s31
      %s34 = sphi 0, %s32
      %s35 = sphi 0, %s33
      %s36 = sphi 0, %s34
      %s46 = sphi 0, %s48
      %s49 = sphi 0, %s46
      %s50 = sphi 0, %s49
      %s66 = sphi 0, %s50
      %s74 = sphi 0, %s76
      %s77 = sphi 0, %s74
      %s78 = sphi 0, %s77
      %s94 = sphi 0, %s78
      %s102 = sphi 0, %s104
      %s105 = sphi 0, %s102
      %s106 = sphi 0, %s105
      %s122 = sphi 0, %s106
      %s126 = sphi 0, %s126
      %s128 = sphi 0, %s126
      %s129 = sphi 0, %s128
      %s143 = sphi 0, %s129
      %s147 = sphi 0, %s147
      %s149 = sphi 0, %s147
      %s150 = sphi 0, %s149
      %s164 = sphi 0, %s150
      %s168 = sphi 0, %s168
      %s170 = sphi 0, %s168
      %s171 = sphi 0, %s170
      %s185 = sphi 0, %s171
      %s189 = sphi 0, %s189
      %s191 = sphi 0, %s189
      %s192 = sphi 0, %s191
      %s206 = sphi 0, %s192
      %s212 = sphi 0, %s214
      %s215 = sphi 0, %s212
      %s216 = sphi 0, %s215
      %s232 = sphi 0, %s216
    $region4: #{tpu_custom_call.1} parent=1 // loop_header_branch
      %27 = sbr.rel (%p25) target = $region8
    $region5: #{tpu_custom_call.1} parent=1 // loop_body
      %s29 = ssub.s32 %s24, 1
      %s30 = ssub.s32 %s24, 2
      %s37 = sadd.s32 1, %s32
      %p38 = scmp.ge.s32.totalorder %s37, 2
      %s39 = scalar_select %p38, 0, %s37
      %s40 = sadd.s32 1, %s31
      %s41 = scalar_select %p38, %s40, %s31
      %p42 = scmp.ge.s32.totalorder %s41, 2
      %s43 = scalar_select %p42, 0, %s41
      %s44 = ssub.s32 %s31, %s43
      %p45 = scmp.eq.s32.totalorder %s44, 0
      %s47 = sadd.s32 %s46, 1
      %s48 = scalar_select %p45, %s46, %s47
      %p51 = pneg %p45
      %p52 = scmp.eq.s32.totalorder %s24, 3
      %p53 = por %p51, %p52
      %p54 = scmp.ne.s32.totalorder %s46, %s49
      %p55 = scmp.eq.s32.totalorder %s24, 0
      %p56 = por %p54, %p55
      %p57 = scmp.ne.s32.totalorder %s46, %s49
      %p58 = scmp.eq.s32.totalorder %s29, 3
      %p59 = por %p57, %p58
      %p60 = scmp.ne.s32.totalorder %s49, %s50
      %p61 = scmp.eq.s32.totalorder %s29, 0
      %p62 = por %p60, %p61
      %p63 = scmp.ne.s32.totalorder %s49, %s50
      %p64 = scmp.eq.s32.totalorder %s30, 3
      %p65 = por %p63, %p64
      %p67 = scmp.ne.s32.totalorder %s50, %s66
      %p68 = scmp.eq.s32.totalorder %s30, 0
      %p69 = por %p67, %p68
      %s70 = ssub.s32 %s31, %s43
      %s71 = ssub.s32 %s32, %s39
      %s72 = sor.u32 %s70, %s71
      %p73 = scmp.eq.s32.totalorder %s72, 0
      %s75 = sadd.s32 %s74, 1
      %s76 = scalar_select %p73, %s74, %s75
      %p79 = pneg %p73
      %p80 = scmp.eq.s32.totalorder %s24, 3
      %p81 = por %p79, %p80
      %p82 = scmp.ne.s32.totalorder %s74, %s77
      %p83 = scmp.eq.s32.totalorder %s24, 0
      %p84 = por %p82, %p83
      %p85 = scmp.ne.s32.totalorder %s74, %s77
      %p86 = scmp.eq.s32.totalorder %s29, 3
      %p87 = por %p85, %p86
      %p88 = scmp.ne.s32.totalorder %s77, %s78
      %p89 = scmp.eq.s32.totalorder %s29, 0
      %p90 = por %p88, %p89
      %p91 = scmp.ne.s32.totalorder %s77, %s78
      %p92 = scmp.eq.s32.totalorder %s30, 3
      %p93 = por %p91, %p92
      %p95 = scmp.ne.s32.totalorder %s78, %s94
      %p96 = scmp.eq.s32.totalorder %s30, 0
      %p97 = por %p95, %p96
      %s98 = ssub.s32 %s31, %s43
      %s99 = ssub.s32 %s32, %s39
      %s100 = sor.u32 %s98, %s99
      %p101 = scmp.eq.s32.totalorder %s100, 0
      %s103 = sadd.s32 %s102, 1
      %s104 = scalar_select %p101, %s102, %s103
      %p107 = pneg %p101
      %p108 = scmp.eq.s32.totalorder %s24, 3
      %p109 = por %p107, %p108
      %p110 = scmp.ne.s32.totalorder %s102, %s105
      %p111 = scmp.eq.s32.totalorder %s24, 0
      %p112 = por %p110, %p111
      %p113 = scmp.ne.s32.totalorder %s102, %s105
      %p114 = scmp.eq.s32.totalorder %s29, 3
      %p115 = por %p113, %p114
      %p116 = scmp.ne.s32.totalorder %s105, %s106
      %p117 = scmp.eq.s32.totalorder %s29, 0
      %p118 = por %p116, %p117
      %p119 = scmp.ne.s32.totalorder %s105, %s106
      %p120 = scmp.eq.s32.totalorder %s30, 3
      %p121 = por %p119, %p120
      %p123 = scmp.ne.s32.totalorder %s106, %s122
      %p124 = scmp.eq.s32.totalorder %s30, 0
      %p125 = por %p123, %p124
      %s127 = sadd.s32 %s126, 1
      %p130 = scmp.eq.s32.totalorder %s24, 3
      %p131 = scmp.ne.s32.totalorder %s126, %s128
      %p132 = scmp.eq.s32.totalorder %s24, 0
      %p133 = por %p131, %p132
      %p134 = scmp.ne.s32.totalorder %s126, %s128
      %p135 = scmp.eq.s32.totalorder %s29, 3
      %p136 = por %p134, %p135
      %p137 = scmp.ne.s32.totalorder %s128, %s129
      %p138 = scmp.eq.s32.totalorder %s29, 0
      %p139 = por %p137, %p138
      %p140 = scmp.ne.s32.totalorder %s128, %s129
      %p141 = scmp.eq.s32.totalorder %s30, 3
      %p142 = por %p140, %p141
      %p144 = scmp.ne.s32.totalorder %s129, %s143
      %p145 = scmp.eq.s32.totalorder %s30, 0
      %p146 = por %p144, %p145
      %s148 = sadd.s32 %s147, 1
      %p151 = scmp.eq.s32.totalorder %s24, 3
      %p152 = scmp.ne.s32.totalorder %s147, %s149
      %p153 = scmp.eq.s32.totalorder %s24, 0
      %p154 = por %p152, %p153
      %p155 = scmp.ne.s32.totalorder %s147, %s149
      %p156 = scmp.eq.s32.totalorder %s29, 3
      %p157 = por %p155, %p156
      %p158 = scmp.ne.s32.totalorder %s149, %s150
      %p159 = scmp.eq.s32.totalorder %s29, 0
      %p160 = por %p158, %p159
      %p161 = scmp.ne.s32.totalorder %s149, %s150
      %p162 = scmp.eq.s32.totalorder %s30, 3
      %p163 = por %p161, %p162
      %p165 = scmp.ne.s32.totalorder %s150, %s164
      %p166 = scmp.eq.s32.totalorder %s30, 0
      %p167 = por %p165, %p166
      %s169 = sadd.s32 %s168, 1
      %p172 = scmp.eq.s32.totalorder %s24, 3
      %p173 = scmp.ne.s32.totalorder %s168, %s170
      %p174 = scmp.eq.s32.totalorder %s24, 0
      %p175 = por %p173, %p174
      %p176 = scmp.ne.s32.totalorder %s168, %s170
      %p177 = scmp.eq.s32.totalorder %s29, 3
      %p178 = por %p176, %p177
      %p179 = scmp.ne.s32.totalorder %s170, %s171
      %p180 = scmp.eq.s32.totalorder %s29, 0
      %p181 = por %p179, %p180
      %p182 = scmp.ne.s32.totalorder %s170, %s171
      %p183 = scmp.eq.s32.totalorder %s30, 3
      %p184 = por %p182, %p183
      %p186 = scmp.ne.s32.totalorder %s171, %s185
      %p187 = scmp.eq.s32.totalorder %s30, 0
      %p188 = por %p186, %p187
      %s190 = sadd.s32 %s189, 1
      %p193 = scmp.eq.s32.totalorder %s24, 3
      %p194 = scmp.ne.s32.totalorder %s189, %s191
      %p195 = scmp.eq.s32.totalorder %s24, 0
      %p196 = por %p194, %p195
      %p197 = scmp.ne.s32.totalorder %s189, %s191
      %p198 = scmp.eq.s32.totalorder %s29, 3
      %p199 = por %p197, %p198
      %p200 = scmp.ne.s32.totalorder %s191, %s192
      %p201 = scmp.eq.s32.totalorder %s29, 0
      %p202 = por %p200, %p201
      %p203 = scmp.ne.s32.totalorder %s191, %s192
      %p204 = scmp.eq.s32.totalorder %s30, 3
      %p205 = por %p203, %p204
      %p207 = scmp.ne.s32.totalorder %s192, %s206
      %p208 = scmp.eq.s32.totalorder %s30, 0
      %p209 = por %p207, %p208
      %s210 = ssub.s32 %s31, %s43
      %p211 = scmp.eq.s32.totalorder %s210, 0
      %s213 = sadd.s32 %s212, 1
      %s214 = scalar_select %p211, %s212, %s213
      %p217 = pneg %p211
      %p218 = scmp.eq.s32.totalorder %s24, 3
      %p219 = por %p217, %p218
      %p220 = scmp.ne.s32.totalorder %s212, %s215
      %p221 = scmp.eq.s32.totalorder %s24, 0
      %p222 = por %p220, %p221
      %p223 = scmp.ne.s32.totalorder %s212, %s215
      %p224 = scmp.eq.s32.totalorder %s29, 3
      %p225 = por %p223, %p224
      %p226 = scmp.ne.s32.totalorder %s215, %s216
      %p227 = scmp.eq.s32.totalorder %s29, 0
      %p228 = por %p226, %p227
      %p229 = scmp.ne.s32.totalorder %s215, %s216
      %p230 = scmp.eq.s32.totalorder %s30, 3
      %p231 = por %p229, %p230
      %p233 = scmp.ne.s32.totalorder %s216, %s232
      %p234 = scmp.eq.s32.totalorder %s30, 0
      %p235 = por %p233, %p234
      %p236 = scmp.le.s32.totalorder 1, %s24
      %p237 = scmp.lt.s32.totalorder %s24, 5
      %p238 = pnand %p236, %p237
      %p239 = pneg %p238
      // Predicated region
      $region9: #{tpu_custom_call.1} parent=5 // pred_check
        _
      $region10: #{tpu_custom_call.1} parent=5 // pred_check_branch
        %241 = sbr.rel (%p238) target = $region12
      $region11: #{tpu_custom_call.1} parent=5 // pred_region
        %s242 = ssub.s32 %s24, 1
        // Predicated region
        $region13: #{tpu_custom_call.1} parent=11 // pred_check
          %p243 = pneg %p139
        $region14: #{tpu_custom_call.1} parent=11 // pred_check_branch
          %245 = sbr.rel (%p243) target = $region16
        $region15: #{tpu_custom_call.1} parent=11 // pred_region
          %s247 = ssub.s32 512, 512
          %248 = vsyncadd [#allocation12], %s247
          %s249 = sshll.u32 [#allocation11], 4
          %s250 = int_to_ptr.vmem [resolvable:$true] %s249
          %255 = dma.hbm_to_vmem [thread:$0]  %s3, 512, %s250, [#allocation12], 128, 128, 8
        $region16: #{tpu_custom_call.1} parent=11 // pred_fallthru
          _
        // Predicated region
        $region17: #{tpu_custom_call.1} parent=11 // pred_check
          %p256 = pneg %p160
        $region18: #{tpu_custom_call.1} parent=11 // pred_check_branch
          %258 = sbr.rel (%p256) target = $region20
        $region19: #{tpu_custom_call.1} parent=11 // pred_region
          %s260 = ssub.s32 512, 512
          %261 = vsyncadd [#allocation12], %s260
          %s262 = sshll.u32 [#allocation13], 4
          %s263 = int_to_ptr.vmem [resolvable:$true] %s262
          %268 = dma.hbm_to_vmem [thread:$0]  %s4, 512, %s263, [#allocation12], 128, 128, 8
        $region20: #{tpu_custom_call.1} parent=11 // pred_fallthru
          _
        // Predicated region
        $region21: #{tpu_custom_call.1} parent=11 // pred_check
          %p269 = pneg %p181
        $region22: #{tpu_custom_call.1} parent=11 // pred_check_branch
          %271 = sbr.rel (%p269) target = $region24
        $region23: #{tpu_custom_call.1} parent=11 // pred_region
          %s273 = ssub.s32 512, 512
          %274 = vsyncadd [#allocation15], %s273
          %s275 = sshll.u32 [#allocation14], 4
          %s276 = int_to_ptr.vmem [resolvable:$true] %s275
          %281 = dma.hbm_to_vmem [thread:$0]  %s5, 512, %s276, [#allocation15], 128, 128, 8
        $region24: #{tpu_custom_call.1} parent=11 // pred_fallthru
          _
        // Predicated region
        $region25: #{tpu_custom_call.1} parent=11 // pred_check
          %p282 = pneg %p202
        $region26: #{tpu_custom_call.1} parent=11 // pred_check_branch
          %284 = sbr.rel (%p282) target = $region28
        $region27: #{tpu_custom_call.1} parent=11 // pred_region
          %s286 = ssub.s32 512, 512
          %287 = vsyncadd [#allocation15], %s286
          %s288 = sshll.u32 [#allocation16], 4
          %s289 = int_to_ptr.vmem [resolvable:$true] %s288
          %294 = dma.hbm_to_vmem [thread:$0]  %s6, 512, %s289, [#allocation15], 128, 128, 8
        $region28: #{tpu_custom_call.1} parent=11 // pred_fallthru
          _
      $region12: #{tpu_custom_call.1} parent=5 // pred_fallthru
        _
      %p295 = scmp.lt.s32.totalorder %s24, 4
      // Predicated region
      $region29: #{tpu_custom_call.1} parent=5 // pred_check
        %p296 = pneg %p295
      $region30: #{tpu_custom_call.1} parent=5 // pred_check_branch
        %298 = sbr.rel (%p296) target = $region32
      $region31: #{tpu_custom_call.1} parent=5 // pred_region
        // Predicated region
        $region33: #{tpu_custom_call.1} parent=31 // pred_check
          %p299 = pneg %p56
        $region34: #{tpu_custom_call.1} parent=31 // pred_check_branch
          %301 = sbr.rel (%p299) target = $region36
        $region35: #{tpu_custom_call.1} parent=31 // pred_region
          %s302 = sand.u32 %s46, 1
          %s303 = scalar_lea.sflag [#allocation6], %s302
          %s304 = sand.u32 %s46, 1
          %s305 = smul.addr %s304, 8
          %s306 = scalar_lea.vmem [#allocation5], %s305
          %s308 = ssub.s32 128, 128
          %309 = vsyncadd %s303, %s308
          %s310 = smul.addr %s31, 128
          %s311 = scalar_lea.hbm %s0, %s310
          %s313 = sshll.u32 %s306, 4
          %s314 = int_to_ptr.vmem [resolvable:$true] %s313
          %316 = dma.hbm_to_vmem [thread:$0]  %s311, 128, %s314, %s303
        $region36: #{tpu_custom_call.1} parent=31 // pred_fallthru
          _
        // Predicated region
        $region37: #{tpu_custom_call.1} parent=31 // pred_check
          %p317 = pneg %p84
        $region38: #{tpu_custom_call.1} parent=31 // pred_check_branch
          %319 = sbr.rel (%p317) target = $region40
        $region39: #{tpu_custom_call.1} parent=31 // pred_region
          %s320 = sand.u32 %s24, 1
          %s321 = scalar_lea.sflag [#allocation9], %s320
          %s322 = sand.u32 %s74, 1
          %s323 = smul.addr %s322, 8
          %s324 = scalar_lea.vmem [#allocation8], %s323
          %s326 = ssub.s32 128, 128
          %327 = vsyncadd %s321, %s326
          %s328 = smul.addr %s31, 2
          %s329 = sadd.s32 %s32, %s328
          %s330 = smul.addr %s329, 128
          %s331 = scalar_lea.hbm %s1, %s330
          %s333 = sshll.u32 %s324, 4
          %s334 = int_to_ptr.vmem [resolvable:$true] %s333
          %336 = dma.hbm_to_vmem [thread:$0]  %s331, 128, %s334, %s321
        $region40: #{tpu_custom_call.1} parent=31 // pred_fallthru
          _
        // Predicated region
        $region41: #{tpu_custom_call.1} parent=31 // pred_check
          %p337 = pneg %p112
        $region42: #{tpu_custom_call.1} parent=31 // pred_check_branch
          %339 = sbr.rel (%p337) target = $region44
        $region43: #{tpu_custom_call.1} parent=31 // pred_region
          %s340 = sand.u32 %s24, 1
          %s341 = scalar_lea.sflag [#allocation9], %s340
          %s342 = sand.u32 %s102, 1
          %s343 = smul.addr %s342, 8
          %s344 = scalar_lea.vmem [#allocation10], %s343
          %s346 = ssub.s32 128, 128
          %347 = vsyncadd %s341, %s346
          %s348 = smul.addr %s31, 2
          %s349 = sadd.s32 %s32, %s348
          %s350 = smul.addr %s349, 128
          %s351 = scalar_lea.hbm %s2, %s350
          %s353 = sshll.u32 %s344, 4
          %s354 = int_to_ptr.vmem [resolvable:$true] %s353
          %356 = dma.hbm_to_vmem [thread:$0]  %s351, 128, %s354, %s341
        $region44: #{tpu_custom_call.1} parent=31 // pred_fallthru
          _
      $region32: #{tpu_custom_call.1} parent=5 // pred_fallthru
        _
      %p357 = scmp.le.s32.totalorder 1, %s24
      %p358 = scmp.lt.s32.totalorder %s24, 5
      %p359 = pnand %p357, %p358
      %p360 = pneg %p359
      // Predicated region
      $region45: #{tpu_custom_call.1} parent=5 // pred_check
        _
      $region46: #{tpu_custom_call.1} parent=5 // pred_check_branch
        %362 = sbr.rel (%p359) target = $region48
      $region47: #{tpu_custom_call.1} parent=5 // pred_region
        %s363 = ssub.s32 %s24, 1
        %s364 = sand.u32 %s49, 1
        %s365 = scalar_lea.sflag [#allocation6], %s364
        %s366 = sand.u32 %s49, 1
        %s367 = smul.addr %s366, 8
        %s368 = scalar_lea.vmem [#allocation5], %s367
        // Predicated region
        $region49: #{tpu_custom_call.1} parent=47 // pred_check
          %p369 = pneg %p62
        $region50: #{tpu_custom_call.1} parent=47 // pred_check_branch
          %371 = sbr.rel (%p369) target = $region52
        $region51: #{tpu_custom_call.1} parent=47 // pred_region
          %372 = dma.done %s365, 128
        $region52: #{tpu_custom_call.1} parent=47 // pred_fallthru
          _
        %s373 = sand.u32 %s29, 1
        %s374 = scalar_lea.sflag [#allocation9], %s373
        %s375 = sand.u32 %s77, 1
        %s376 = smul.addr %s375, 8
        %s377 = scalar_lea.vmem [#allocation8], %s376
        // Predicated region
        $region53: #{tpu_custom_call.1} parent=47 // pred_check
          %p378 = pneg %p90
        $region54: #{tpu_custom_call.1} parent=47 // pred_check_branch
          %380 = sbr.rel (%p378) target = $region56
        $region55: #{tpu_custom_call.1} parent=47 // pred_region
          %381 = dma.done %s374, 128
        $region56: #{tpu_custom_call.1} parent=47 // pred_fallthru
          _
        %s382 = sand.u32 %s29, 1
        %s383 = scalar_lea.sflag [#allocation9], %s382
        %s384 = sand.u32 %s105, 1
        %s385 = smul.addr %s384, 8
        %s386 = scalar_lea.vmem [#allocation10], %s385
        // Predicated region
        $region57: #{tpu_custom_call.1} parent=47 // pred_check
          %p387 = pneg %p118
        $region58: #{tpu_custom_call.1} parent=47 // pred_check_branch
          %389 = sbr.rel (%p387) target = $region60
        $region59: #{tpu_custom_call.1} parent=47 // pred_region
          %390 = dma.done %s383, 128
        $region60: #{tpu_custom_call.1} parent=47 // pred_fallthru
          _
        // Predicated region
        $region61: #{tpu_custom_call.1} parent=47 // pred_check
          %p391 = pneg %p139
        $region62: #{tpu_custom_call.1} parent=47 // pred_check_branch
          %393 = sbr.rel (%p391) target = $region64
        $region63: #{tpu_custom_call.1} parent=47 // pred_region
          %394 = dma.done [#allocation12], 512
        $region64: #{tpu_custom_call.1} parent=47 // pred_fallthru
          _
        // Predicated region
        $region65: #{tpu_custom_call.1} parent=47 // pred_check
          %p395 = pneg %p160
        $region66: #{tpu_custom_call.1} parent=47 // pred_check_branch
          %397 = sbr.rel (%p395) target = $region68
        $region67: #{tpu_custom_call.1} parent=47 // pred_region
          %398 = dma.done [#allocation12], 512
        $region68: #{tpu_custom_call.1} parent=47 // pred_fallthru
          _
        // Predicated region
        $region69: #{tpu_custom_call.1} parent=47 // pred_check
          %p399 = pneg %p181
        $region70: #{tpu_custom_call.1} parent=47 // pred_check_branch
          %401 = sbr.rel (%p399) target = $region72
        $region71: #{tpu_custom_call.1} parent=47 // pred_region
          %402 = dma.done [#allocation15], 512
        $region72: #{tpu_custom_call.1} parent=47 // pred_fallthru
          _
        // Predicated region
        $region73: #{tpu_custom_call.1} parent=47 // pred_check
          %p403 = pneg %p202
        $region74: #{tpu_custom_call.1} parent=47 // pred_check_branch
          %405 = sbr.rel (%p403) target = $region76
        $region75: #{tpu_custom_call.1} parent=47 // pred_region
          %406 = dma.done [#allocation15], 512
        $region76: #{tpu_custom_call.1} parent=47 // pred_fallthru
          _
        %s407 = sand.u32 %s49, 1
        %s408 = scalar_lea.sflag [#allocation6], %s407
        %s409 = sand.u32 %s49, 1
        %s410 = smul.addr %s409, 8
        %s411 = scalar_lea.vmem [#allocation5], %s410
        %p412 = pneg %p62
        %p413 = pneg %p59
        %s414 = sand.u32 %s29, 1
        %s415 = scalar_lea.sflag [#allocation9], %s414
        %s416 = sand.u32 %s77, 1
        %s417 = smul.addr %s416, 8
        %s418 = scalar_lea.vmem [#allocation8], %s417
        %p419 = pneg %p90
        %p420 = pneg %p87
        %s421 = sand.u32 %s29, 1
        %s422 = scalar_lea.sflag [#allocation9], %s421
        %s423 = sand.u32 %s105, 1
        %s424 = smul.addr %s423, 8
        %s425 = scalar_lea.vmem [#allocation10], %s424
        %p426 = pneg %p118
        %p427 = pneg %p115
        %p428 = pneg %p139
        %p429 = pneg %p136
        %p430 = pneg %p160
        %p431 = pneg %p157
        %p432 = pneg %p181
        %p433 = pneg %p178
        %p434 = pneg %p202
        %p435 = pneg %p199
        %p436 = pneg %p228
        %p437 = pneg %p225
        %s438 = sand.u32 %s215, 1
        %s439 = scalar_lea.sflag [#allocation7], %s438
        %s440 = sand.u32 %s215, 1
        %s441 = smul.addr %s440, 8
        %s442 = scalar_lea.vmem [#allocation17], %s441
        %p443 = scmp.eq.s32.totalorder %s34, 0
        // Predicated region
        $region77: #{tpu_custom_call.1} parent=47 // pred_check
          %p444 = pneg %p443
        $region78: #{tpu_custom_call.1} parent=47 // pred_check_branch
          %446 = sbr.rel (%p444) target = $region80
        $region79: #{tpu_custom_call.1} parent=47 // pred_region
          %v447 = vld [vmem:[%s368] sm:$0xff]
          %v448 = vld [vmem:[#allocation11] sm:$0xff]
          %v449 = vld [vmem:[#allocation11 + $0x8] sm:$0xff]
          %v450 = vld [vmem:[#allocation11 + $0x10] sm:$0xff]
          %v451 = vld [vmem:[#allocation11 + $0x18] sm:$0xff]
          %vm452 = vcmask 261120
          %v454 = vsel %vm452, %v447, 0
          %456 = vmatprep.subr.mxu0 0.0
          %457 = vmatpush1.msra.mxu0 0.0
          %458 = vmatprep.subr.mxu0 0.0
          %459 = vmatpush1.msra.mxu0 0.0
          %460 = vmatprep.subr.mxu0 0.0
          %461 = vmatpush1.msra.mxu0 0.0
          %462 = vmatprep.subr.mxu0 0.0
          %463 = vmatpush1.msra.mxu0 0.0
          %464 = vmatprep.subr.mxu0 0.0
          %465 = vmatpush1.msra.mxu0 0.0
          %466 = vmatprep.subr.mxu0 0.0
          %467 = vmatpush1.msra.mxu0 0.0
          %468 = vmatprep.subr.mxu0 0.0
          %469 = vmatpush1.msra.mxu0 0.0
          %470 = vmatprep.subr.mxu0 0.0
          %471 = vmatpush1.msra.mxu0 0.0
          %472 = vmatprep.subr.mxu0 0.0
          %473 = vmatpush1.msra.mxu0 0.0
          %474 = vmatprep.subr.mxu0 0.0
          %475 = vmatpush1.msra.mxu0 0.0
          %476 = vmatprep.subr.mxu0 0.0
          %477 = vmatpush1.msra.mxu0 0.0
          %478 = vmatprep.subr.mxu0 0.0
          %479 = vmatpush1.msra.mxu0 0.0
          %480 = vmatprep.subr.mxu0 0.0
          %481 = vmatpush1.msra.mxu0 %v451
          %482 = vmatprep.subr.mxu0 0.0
          %483 = vmatpush1.msra.mxu0 %v450
          %484 = vmatprep.subr.mxu0 0.0
          %485 = vmatpush1.msra.mxu0 %v449
          %486 = vmatprep.subr.mxu0 0.0
          %487 = vmatpush1.msra.mxu0 %v448
          %488 = vmatprep.subr.mxu0 0.0
          %489 = vmatpush2.msra.mxu0 0.0
          %490 = vmatprep.subr.mxu0 0.0
          %491 = vmatpush2.msra.mxu0 0.0
          %492 = vmatprep.subr.mxu0 0.0
          %493 = vmatpush2.msra.mxu0 0.0
          %494 = vmatprep.subr.mxu0 0.0
          %495 = vmatpush2.msra.mxu0 0.0
          %496 = vmatprep.subr.mxu0 0.0
          %497 = vmatpush2.msra.mxu0 0.0
          %498 = vmatprep.subr.mxu0 0.0
          %499 = vmatpush2.msra.mxu0 0.0
          %500 = vmatprep.subr.mxu0 0.0
          %501 = vmatpush2.msra.mxu0 0.0
          %502 = vmatprep.subr.mxu0 0.0
          %503 = vmatpush2.msra.mxu0 0.0
          %504 = vmatprep.subr.mxu0 0.0
          %505 = vmatpush2.msra.mxu0 0.0
          %506 = vmatprep.subr.mxu0 0.0
          %507 = vmatpush2.msra.mxu0 0.0
          %508 = vmatprep.subr.mxu0 0.0
          %509 = vmatpush2.msra.mxu0 0.0
          %510 = vmatprep.subr.mxu0 0.0
          %511 = vmatpush2.msra.mxu0 0.0
          %512 = vmatprep.subr.mxu0 0.0
          %513 = vmatpush2.msra.mxu0 0.0
          %514 = vmatprep.subr.mxu0 0.0
          %515 = vmatpush2.msra.mxu0 0.0
          %516 = vmatprep.subr.mxu0 0.0
          %517 = vmatpush2.msra.mxu0 0.0
          %518 = vmatprep.subr.mxu0 0.0
          %519 = vmatpush2.msra.mxu0 0.0
          %520 = vmatprep.mubr.f32.mxu0 0.0
          %521 = vmatmul.mubr.f32.gmra.mxu0 %v454
          %v522 = vpop.f32.mrf.mxu0
          %v523 = vadd.f32 0.0, %v522
          %v524 = vpop.f32.mrf.mxu0
          %525 = vdwg.mxu0
          %526 = vst.msk [vmem:[#allocation2] sm:$0xff] %vm452, %v523
          %527 = vst.msk [vmem:[#allocation3] sm:$0xff] %vm452, 0.0
          %vm528 = vcmask 31744
          %529 = vst.msk [vmem:[#allocation4] sm:$0xff] %vm528, 0.0
        $region80: #{tpu_custom_call.1} parent=47 // pred_fallthru
          _
        %v530 = vld [vmem:[%s377] sm:$0xff]
        %v531 = vld [vmem:[%s386] sm:$0xff]
        %v532 = vld [vmem:[#allocation13] sm:$0xff]
        %v533 = vld [vmem:[#allocation13 + $0x8] sm:$0xff]
        %v534 = vld [vmem:[#allocation13 + $0x10] sm:$0xff]
        %v535 = vld [vmem:[#allocation13 + $0x18] sm:$0xff]
        %vm536 = vcmask 261120
        %v538 = vsel %vm536, %v530, 0
        %540 = vmatprep.subr.mxu0 0.0
        %541 = vmatpush1.msra.mxu0 0.0
        %542 = vmatprep.subr.mxu0 0.0
        %543 = vmatpush1.msra.mxu0 0.0
        %544 = vmatprep.subr.mxu0 0.0
        %545 = vmatpush1.msra.mxu0 0.0
        %546 = vmatprep.subr.mxu0 0.0
        %547 = vmatpush1.msra.mxu0 0.0
        %548 = vmatprep.subr.mxu0 0.0
        %549 = vmatpush1.msra.mxu0 0.0
        %550 = vmatprep.subr.mxu0 0.0
        %551 = vmatpush1.msra.mxu0 0.0
        %552 = vmatprep.subr.mxu0 0.0
        %553 = vmatpush1.msra.mxu0 0.0
        %554 = vmatprep.subr.mxu0 0.0
        %555 = vmatpush1.msra.mxu0 0.0
        %556 = vmatprep.subr.mxu0 0.0
        %557 = vmatpush1.msra.mxu0 0.0
        %558 = vmatprep.subr.mxu0 0.0
        %559 = vmatpush1.msra.mxu0 0.0
        %560 = vmatprep.subr.mxu0 0.0
        %561 = vmatpush1.msra.mxu0 0.0
        %562 = vmatprep.subr.mxu0 0.0
        %563 = vmatpush1.msra.mxu0 0.0
        %564 = vmatprep.subr.mxu0 0.0
        %565 = vmatpush1.msra.mxu0 %v535
        %566 = vmatprep.subr.mxu0 0.0
        %567 = vmatpush1.msra.mxu0 %v534
        %568 = vmatprep.subr.mxu0 0.0
        %569 = vmatpush1.msra.mxu0 %v533
        %570 = vmatprep.subr.mxu0 0.0
        %571 = vmatpush1.msra.mxu0 %v532
        %572 = vmatprep.subr.mxu0 0.0
        %573 = vmatpush2.msra.mxu0 0.0
        %574 = vmatprep.subr.mxu0 0.0
        %575 = vmatpush2.msra.mxu0 0.0
        %576 = vmatprep.subr.mxu0 0.0
        %577 = vmatpush2.msra.mxu0 0.0
        %578 = vmatprep.subr.mxu0 0.0
        %579 = vmatpush2.msra.mxu0 0.0
        %580 = vmatprep.subr.mxu0 0.0
        %581 = vmatpush2.msra.mxu0 0.0
        %582 = vmatprep.subr.mxu0 0.0
        %583 = vmatpush2.msra.mxu0 0.0
        %584 = vmatprep.subr.mxu0 0.0
        %585 = vmatpush2.msra.mxu0 0.0
        %586 = vmatprep.subr.mxu0 0.0
        %587 = vmatpush2.msra.mxu0 0.0
        %588 = vmatprep.subr.mxu0 0.0
        %589 = vmatpush2.msra.mxu0 0.0
        %590 = vmatprep.subr.mxu0 0.0
        %591 = vmatpush2.msra.mxu0 0.0
        %592 = vmatprep.subr.mxu0 0.0
        %593 = vmatpush2.msra.mxu0 0.0
        %594 = vmatprep.subr.mxu0 0.0
        %595 = vmatpush2.msra.mxu0 0.0
        %596 = vmatprep.subr.mxu0 0.0
        %597 = vmatpush2.msra.mxu0 0.0
        %598 = vmatprep.subr.mxu0 0.0
        %599 = vmatpush2.msra.mxu0 0.0
        %600 = vmatprep.subr.mxu0 0.0
        %601 = vmatpush2.msra.mxu0 0.0
        %602 = vmatprep.subr.mxu0 0.0
        %603 = vmatpush2.msra.mxu0 0.0
        %604 = vmatprep.mubr.f32.mxu0 0.0
        %605 = vmatmul.mubr.f32.gmra.mxu0 %v538
        %v606 = vpop.f32.mrf.mxu0
        %v607 = vadd.f32 0.0, %v606
        %v608 = vpop.f32.mrf.mxu0
        %609 = vdwg.mxu0
        %v610 = vld [vmem:[#allocation14] sm:$0xff]
        %v611 = vld [vmem:[#allocation14 + $0x8] sm:$0xff]
        %v612 = vld [vmem:[#allocation14 + $0x10] sm:$0xff]
        %v613 = vld [vmem:[#allocation14 + $0x18] sm:$0xff]
        %v615 = vsel %vm536, %v531, 0
        %617 = vmatprep.subr.mxu0 0.0
        %618 = vmatpush1.msra.mxu0 0.0
        %619 = vmatprep.subr.mxu0 0.0
        %620 = vmatpush1.msra.mxu0 0.0
        %621 = vmatprep.subr.mxu0 0.0
        %622 = vmatpush1.msra.mxu0 0.0
        %623 = vmatprep.subr.mxu0 0.0
        %624 = vmatpush1.msra.mxu0 0.0
        %625 = vmatprep.subr.mxu0 0.0
        %626 = vmatpush1.msra.mxu0 0.0
        %627 = vmatprep.subr.mxu0 0.0
        %628 = vmatpush1.msra.mxu0 0.0
        %629 = vmatprep.subr.mxu0 0.0
        %630 = vmatpush1.msra.mxu0 0.0
        %631 = vmatprep.subr.mxu0 0.0
        %632 = vmatpush1.msra.mxu0 0.0
        %633 = vmatprep.subr.mxu0 0.0
        %634 = vmatpush1.msra.mxu0 0.0
        %635 = vmatprep.subr.mxu0 0.0
        %636 = vmatpush1.msra.mxu0 0.0
        %637 = vmatprep.subr.mxu0 0.0
        %638 = vmatpush1.msra.mxu0 0.0
        %639 = vmatprep.subr.mxu0 0.0
        %640 = vmatpush1.msra.mxu0 0.0
        %641 = vmatprep.subr.mxu0 0.0
        %642 = vmatpush1.msra.mxu0 %v613
        %643 = vmatprep.subr.mxu0 0.0
        %644 = vmatpush1.msra.mxu0 %v612
        %645 = vmatprep.subr.mxu0 0.0
        %646 = vmatpush1.msra.mxu0 %v611
        %647 = vmatprep.subr.mxu0 0.0
        %648 = vmatpush1.msra.mxu0 %v610
        %649 = vmatprep.subr.mxu0 0.0
        %650 = vmatpush2.msra.mxu0 0.0
        %651 = vmatprep.subr.mxu0 0.0
        %652 = vmatpush2.msra.mxu0 0.0
        %653 = vmatprep.subr.mxu0 0.0
        %654 = vmatpush2.msra.mxu0 0.0
        %655 = vmatprep.subr.mxu0 0.0
        %656 = vmatpush2.msra.mxu0 0.0
        %657 = vmatprep.subr.mxu0 0.0
        %658 = vmatpush2.msra.mxu0 0.0
        %659 = vmatprep.subr.mxu0 0.0
        %660 = vmatpush2.msra.mxu0 0.0
        %661 = vmatprep.subr.mxu0 0.0
        %662 = vmatpush2.msra.mxu0 0.0
        %663 = vmatprep.subr.mxu0 0.0
        %664 = vmatpush2.msra.mxu0 0.0
        %665 = vmatprep.subr.mxu0 0.0
        %666 = vmatpush2.msra.mxu0 0.0
        %667 = vmatprep.subr.mxu0 0.0
        %668 = vmatpush2.msra.mxu0 0.0
        %669 = vmatprep.subr.mxu0 0.0
        %670 = vmatpush2.msra.mxu0 0.0
        %671 = vmatprep.subr.mxu0 0.0
        %672 = vmatpush2.msra.mxu0 0.0
        %673 = vmatprep.subr.mxu0 0.0
        %674 = vmatpush2.msra.mxu0 0.0
        %675 = vmatprep.subr.mxu0 0.0
        %676 = vmatpush2.msra.mxu0 0.0
        %677 = vmatprep.subr.mxu0 0.0
        %678 = vmatpush2.msra.mxu0 0.0
        %679 = vmatprep.subr.mxu0 0.0
        %680 = vmatpush2.msra.mxu0 0.0
        %681 = vmatprep.mubr.f32.mxu0 0.0
        %682 = vmatmul.mubr.f32.gmra.mxu0 %v615
        %v683 = vpop.f32.mrf.mxu0
        %v684 = vadd.f32 0.0, %v683
        %v685 = vpop.f32.mrf.mxu0
        %686 = vdwg.mxu0
        %v687 = vld [vmem:[#allocation2] sm:$0xff]
        %vm688 = vcmask 64512
        %v690 = vsel %vm688, %v607, 0
        %v693 = vsel %vm688, %v687, 0
        %695 = vmatprep.subr.mxu0 0.0
        %696 = vmatpush1.xpose.msra.mxu0 0.0
        %697 = vmatprep.subr.mxu0 0.0
        %698 = vmatpush1.xpose.msra.mxu0 0.0
        %699 = vmatprep.subr.mxu0 0.0
        %700 = vmatpush1.xpose.msra.mxu0 0.0
        %701 = vmatprep.subr.mxu0 0.0
        %702 = vmatpush1.xpose.msra.mxu0 0.0
        %703 = vmatprep.subr.mxu0 0.0
        %704 = vmatpush1.xpose.msra.mxu0 0.0
        %705 = vmatprep.subr.mxu0 0.0
        %706 = vmatpush1.xpose.msra.mxu0 0.0
        %707 = vmatprep.subr.mxu0 0.0
        %708 = vmatpush1.xpose.msra.mxu0 0.0
        %709 = vmatprep.subr.mxu0 0.0
        %710 = vmatpush1.xpose.msra.mxu0 0.0
        %711 = vmatprep.subr.mxu0 0.0
        %712 = vmatpush1.xpose.msra.mxu0 0.0
        %713 = vmatprep.subr.mxu0 0.0
        %714 = vmatpush1.xpose.msra.mxu0 0.0
        %715 = vmatprep.subr.mxu0 0.0
        %716 = vmatpush1.xpose.msra.mxu0 0.0
        %717 = vmatprep.subr.mxu0 0.0
        %718 = vmatpush1.xpose.msra.mxu0 0.0
        %719 = vmatprep.subr.mxu0 0.0
        %720 = vmatpush1.xpose.msra.mxu0 0.0
        %721 = vmatprep.subr.mxu0 0.0
        %722 = vmatpush1.xpose.msra.mxu0 0.0
        %723 = vmatprep.subr.mxu0 0.0
        %724 = vmatpush1.xpose.msra.mxu0 0.0
        %725 = vmatprep.subr.mxu0 0.0
        %726 = vmatpush1.xpose.msra.mxu0 %v693
        %727 = vmatprep.subr.mxu0 0.0
        %728 = vmatpush2.xpose.msra.mxu0 0.0
        %729 = vmatprep.subr.mxu0 0.0
        %730 = vmatpush2.xpose.msra.mxu0 0.0
        %731 = vmatprep.subr.mxu0 0.0
        %732 = vmatpush2.xpose.msra.mxu0 0.0
        %733 = vmatprep.subr.mxu0 0.0
        %734 = vmatpush2.xpose.msra.mxu0 0.0
        %735 = vmatprep.subr.mxu0 0.0
        %736 = vmatpush2.xpose.msra.mxu0 0.0
        %737 = vmatprep.subr.mxu0 0.0
        %738 = vmatpush2.xpose.msra.mxu0 0.0
        %739 = vmatprep.subr.mxu0 0.0
        %740 = vmatpush2.xpose.msra.mxu0 0.0
        %741 = vmatprep.subr.mxu0 0.0
        %742 = vmatpush2.xpose.msra.mxu0 0.0
        %743 = vmatprep.subr.mxu0 0.0
        %744 = vmatpush2.xpose.msra.mxu0 0.0
        %745 = vmatprep.subr.mxu0 0.0
        %746 = vmatpush2.xpose.msra.mxu0 0.0
        %747 = vmatprep.subr.mxu0 0.0
        %748 = vmatpush2.xpose.msra.mxu0 0.0
        %749 = vmatprep.subr.mxu0 0.0
        %750 = vmatpush2.xpose.msra.mxu0 0.0
        %751 = vmatprep.subr.mxu0 0.0
        %752 = vmatpush2.xpose.msra.mxu0 0.0
        %753 = vmatprep.subr.mxu0 0.0
        %754 = vmatpush2.xpose.msra.mxu0 0.0
        %755 = vmatprep.subr.mxu0 0.0
        %756 = vmatpush2.xpose.msra.mxu0 0.0
        %757 = vmatprep.subr.mxu0 0.0
        %758 = vmatpush2.xpose.msra.mxu0 0.0
        %759 = vmatprep.mubr.f32.mxu0 0.0
        %760 = vmatmul.mubr.f32.gmra.mxu0 %v690
        %v761 = vpop.f32.mrf.mxu0
        %v762 = vadd.f32 0.0, %v761
        %v763 = vpop.f32.mrf.mxu0
        %764 = vdwg.mxu0
        %v765 = vsel %vm688, %v762, -inf
        %766 = vmax.xlane.f32.xlu0 %v765
        %v767 = vpop.xlane.xlu0 %766
        %v768 = vsub.f32 %v762, %v767
        %v769 = vmul.f32 %v768, 1.442695
        %v770 = vpow.pop %v769
        %v771 = vsel %vm688, %v770, 0.0
        %772 = vadd.xlane.f32.xlu0 %v771
        %v773 = vpop.xlane.xlu0 %772
        %v774 = vrcp.pop %v773
        %v775 = vsel %vm688, %v684, 1.0
        %v776 = vmul.f32 %v775, %v774
        %777 = vxpose.xlu0.b32.start [1/16] %v770, 128
        %778 = vxpose.xlu0.b32.cont [2/16] 0.0, 128
        %779 = vxpose.xlu0.b32.cont [3/16] 0.0, 128
        %780 = vxpose.xlu0.b32.cont [4/16] 0.0, 128
        %781 = vxpose.xlu0.b32.cont [5/16] 0.0, 128
        %782 = vxpose.xlu0.b32.cont [6/16] 0.0, 128
        %783 = vxpose.xlu0.b32.cont [7/16] 0.0, 128
        %784 = vxpose.xlu0.b32.cont [8/16] 0.0, 128
        %785 = vxpose.xlu0.b32.cont [9/16] 0.0, 128
        %786 = vxpose.xlu0.b32.cont [10/16] 0.0, 128
        %787 = vxpose.xlu0.b32.cont [11/16] 0.0, 128
        %788 = vxpose.xlu0.b32.cont [12/16] 0.0, 128
        %789 = vxpose.xlu0.b32.cont [13/16] 0.0, 128
        %790 = vxpose.xlu0.b32.cont [14/16] 0.0, 128
        %791 = vxpose.xlu0.b32.cont [15/16] 0.0, 128
        %792 = vxpose.xlu0.b32.end [16/16] 0.0, 128
        %v793 = vpop.trf.xlu0
        %v794 = vpop.trf.xlu0
        %v795 = vpop.trf.xlu0
        %v796 = vpop.trf.xlu0
        %v797 = vpop.trf.xlu0
        %v798 = vpop.trf.xlu0
        %v799 = vpop.trf.xlu0
        %v800 = vpop.trf.xlu0
        %v801 = vpop.trf.xlu0
        %v802 = vpop.trf.xlu0
        %v803 = vpop.trf.xlu0
        %v804 = vpop.trf.xlu0
        %v805 = vpop.trf.xlu0
        %v806 = vpop.trf.xlu0
        %v807 = vpop.trf.xlu0
        %v808 = vpop.trf.xlu0
        %v810 = vsel %vm688, %v793, 0
        %812 = vmatprep.subr.mxu0 0.0
        %813 = vmatpush1.msra.mxu0 0.0
        %814 = vmatprep.subr.mxu0 0.0
        %815 = vmatpush1.msra.mxu0 0.0
        %816 = vmatprep.subr.mxu0 0.0
        %817 = vmatpush1.msra.mxu0 0.0
        %818 = vmatprep.subr.mxu0 0.0
        %819 = vmatpush1.msra.mxu0 0.0
        %820 = vmatprep.subr.mxu0 0.0
        %821 = vmatpush1.msra.mxu0 0.0
        %822 = vmatprep.subr.mxu0 0.0
        %823 = vmatpush1.msra.mxu0 0.0
        %824 = vmatprep.subr.mxu0 0.0
        %825 = vmatpush1.msra.mxu0 0.0
        %826 = vmatprep.subr.mxu0 0.0
        %827 = vmatpush1.msra.mxu0 0.0
        %828 = vmatprep.subr.mxu0 0.0
        %829 = vmatpush1.msra.mxu0 0.0
        %830 = vmatprep.subr.mxu0 0.0
        %831 = vmatpush1.msra.mxu0 0.0
        %832 = vmatprep.subr.mxu0 0.0
        %833 = vmatpush1.msra.mxu0 0.0
        %834 = vmatprep.subr.mxu0 0.0
        %835 = vmatpush1.msra.mxu0 0.0
        %836 = vmatprep.subr.mxu0 0.0
        %837 = vmatpush1.msra.mxu0 0.0
        %838 = vmatprep.subr.mxu0 0.0
        %839 = vmatpush1.msra.mxu0 0.0
        %840 = vmatprep.subr.mxu0 0.0
        %841 = vmatpush1.msra.mxu0 0.0
        %842 = vmatprep.subr.mxu0 0.0
        %843 = vmatpush1.msra.mxu0 %v776
        %844 = vmatprep.subr.mxu0 0.0
        %845 = vmatpush2.msra.mxu0 0.0
        %846 = vmatprep.subr.mxu0 0.0
        %847 = vmatpush2.msra.mxu0 0.0
        %848 = vmatprep.subr.mxu0 0.0
        %849 = vmatpush2.msra.mxu0 0.0
        %850 = vmatprep.subr.mxu0 0.0
        %851 = vmatpush2.msra.mxu0 0.0
        %852 = vmatprep.subr.mxu0 0.0
        %853 = vmatpush2.msra.mxu0 0.0
        %854 = vmatprep.subr.mxu0 0.0
        %855 = vmatpush2.msra.mxu0 0.0
        %856 = vmatprep.subr.mxu0 0.0
        %857 = vmatpush2.msra.mxu0 0.0
        %858 = vmatprep.subr.mxu0 0.0
        %859 = vmatpush2.msra.mxu0 0.0
        %860 = vmatprep.subr.mxu0 0.0
        %861 = vmatpush2.msra.mxu0 0.0
        %862 = vmatprep.subr.mxu0 0.0
        %863 = vmatpush2.msra.mxu0 0.0
        %864 = vmatprep.subr.mxu0 0.0
        %865 = vmatpush2.msra.mxu0 0.0
        %866 = vmatprep.subr.mxu0 0.0
        %867 = vmatpush2.msra.mxu0 0.0
        %868 = vmatprep.subr.mxu0 0.0
        %869 = vmatpush2.msra.mxu0 0.0
        %870 = vmatprep.subr.mxu0 0.0
        %871 = vmatpush2.msra.mxu0 0.0
        %872 = vmatprep.subr.mxu0 0.0
        %873 = vmatpush2.msra.mxu0 0.0
        %874 = vmatprep.subr.mxu0 0.0
        %875 = vmatpush2.msra.mxu0 0.0
        %876 = vmatprep.mubr.f32.mxu0 0.0
        %877 = vmatmul.mubr.f32.gmra.mxu0 %v810
        %v878 = vpop.f32.mrf.mxu0
        %v879 = vadd.f32 0.0, %v878
        %v880 = vpop.f32.mrf.mxu0
        %881 = vdwg.mxu0
        %v882 = vld [vmem:[#allocation3] sm:$0xff]
        %v883 = vadd.f32 %v882, %v879
        %884 = vst.msk [vmem:[#allocation3] sm:$0xff] %vm688, %v883
        %v885 = vld [vmem:[#allocation4] sm:$0xff]
        %887 = vrot.lane.b32.xlu0 %v879, 120
        %v888 = vpop.permute.xlu0 %887
        %v890 = vadd.f32 %v885, %v888
        %vm891 = vcmask 7168
        %892 = vst.msk [vmem:[#allocation4] sm:$0xff] %vm891, %v890
        %893 = vrot.lane.b32.xlu0 %v607, 120
        %v894 = vpop.permute.xlu0 %893
        %895 = vrot.lane.b32.xlu0 %v687, 120
        %v896 = vpop.permute.xlu0 %895
        %v897 = vsel %vm688, %v894, 0
        %v899 = vsel %vm688, %v896, 0
        %901 = vmatprep.subr.mxu0 0.0
        %902 = vmatpush1.xpose.msra.mxu0 0.0
        %903 = vmatprep.subr.mxu0 0.0
        %904 = vmatpush1.xpose.msra.mxu0 0.0
        %905 = vmatprep.subr.mxu0 0.0
        %906 = vmatpush1.xpose.msra.mxu0 0.0
        %907 = vmatprep.subr.mxu0 0.0
        %908 = vmatpush1.xpose.msra.mxu0 0.0
        %909 = vmatprep.subr.mxu0 0.0
        %910 = vmatpush1.xpose.msra.mxu0 0.0
        %911 = vmatprep.subr.mxu0 0.0
        %912 = vmatpush1.xpose.msra.mxu0 0.0
        %913 = vmatprep.subr.mxu0 0.0
        %914 = vmatpush1.xpose.msra.mxu0 0.0
        %915 = vmatprep.subr.mxu0 0.0
        %916 = vmatpush1.xpose.msra.mxu0 0.0
        %917 = vmatprep.subr.mxu0 0.0
        %918 = vmatpush1.xpose.msra.mxu0 0.0
        %919 = vmatprep.subr.mxu0 0.0
        %920 = vmatpush1.xpose.msra.mxu0 0.0
        %921 = vmatprep.subr.mxu0 0.0
        %922 = vmatpush1.xpose.msra.mxu0 0.0
        %923 = vmatprep.subr.mxu0 0.0
        %924 = vmatpush1.xpose.msra.mxu0 0.0
        %925 = vmatprep.subr.mxu0 0.0
        %926 = vmatpush1.xpose.msra.mxu0 0.0
        %927 = vmatprep.subr.mxu0 0.0
        %928 = vmatpush1.xpose.msra.mxu0 0.0
        %929 = vmatprep.subr.mxu0 0.0
        %930 = vmatpush1.xpose.msra.mxu0 0.0
        %931 = vmatprep.subr.mxu0 0.0
        %932 = vmatpush1.xpose.msra.mxu0 %v899
        %933 = vmatprep.subr.mxu0 0.0
        %934 = vmatpush2.xpose.msra.mxu0 0.0
        %935 = vmatprep.subr.mxu0 0.0
        %936 = vmatpush2.xpose.msra.mxu0 0.0
        %937 = vmatprep.subr.mxu0 0.0
        %938 = vmatpush2.xpose.msra.mxu0 0.0
        %939 = vmatprep.subr.mxu0 0.0
        %940 = vmatpush2.xpose.msra.mxu0 0.0
        %941 = vmatprep.subr.mxu0 0.0
        %942 = vmatpush2.xpose.msra.mxu0 0.0
        %943 = vmatprep.subr.mxu0 0.0
        %944 = vmatpush2.xpose.msra.mxu0 0.0
        %945 = vmatprep.subr.mxu0 0.0
        %946 = vmatpush2.xpose.msra.mxu0 0.0
        %947 = vmatprep.subr.mxu0 0.0
        %948 = vmatpush2.xpose.msra.mxu0 0.0
        %949 = vmatprep.subr.mxu0 0.0
        %950 = vmatpush2.xpose.msra.mxu0 0.0
        %951 = vmatprep.subr.mxu0 0.0
        %952 = vmatpush2.xpose.msra.mxu0 0.0
        %953 = vmatprep.subr.mxu0 0.0
        %954 = vmatpush2.xpose.msra.mxu0 0.0
        %955 = vmatprep.subr.mxu0 0.0
        %956 = vmatpush2.xpose.msra.mxu0 0.0
        %957 = vmatprep.subr.mxu0 0.0
        %958 = vmatpush2.xpose.msra.mxu0 0.0
        %959 = vmatprep.subr.mxu0 0.0
        %960 = vmatpush2.xpose.msra.mxu0 0.0
        %961 = vmatprep.subr.mxu0 0.0
        %962 = vmatpush2.xpose.msra.mxu0 0.0
        %963 = vmatprep.subr.mxu0 0.0
        %964 = vmatpush2.xpose.msra.mxu0 0.0
        %965 = vmatprep.mubr.f32.mxu0 0.0
        %966 = vmatmul.mubr.f32.gmra.mxu0 %v897
        %v967 = vpop.f32.mrf.mxu0
        %v968 = vadd.f32 0.0, %v967
        %v969 = vpop.f32.mrf.mxu0
        %970 = vdwg.mxu0
        %v971 = vsel %vm688, %v968, -inf
        %972 = vmax.xlane.f32.xlu0 %v971
        %v973 = vpop.xlane.xlu0 %972
        %v974 = vsub.f32 %v968, %v973
        %v975 = vmul.f32 %v974, 1.442695
        %v976 = vpow.pop %v975
        %v977 = vsel %vm688, %v976, 0.0
        %978 = vadd.xlane.f32.xlu0 %v977
        %v979 = vpop.xlane.xlu0 %978
        %v980 = vrcp.pop %v979
        %982 = vrot.lane.b32.xlu0 %v684, 120
        %v983 = vpop.permute.xlu0 %982
        %v985 = vsel %vm688, %v983, 1.0
        %v986 = vmul.f32 %v985, %v980
        %987 = vxpose.xlu0.b32.start [1/16] %v976, 128
        %988 = vxpose.xlu0.b32.cont [2/16] 0.0, 128
        %989 = vxpose.xlu0.b32.cont [3/16] 0.0, 128
        %990 = vxpose.xlu0.b32.cont [4/16] 0.0, 128
        %991 = vxpose.xlu0.b32.cont [5/16] 0.0, 128
        %992 = vxpose.xlu0.b32.cont [6/16] 0.0, 128
        %993 = vxpose.xlu0.b32.cont [7/16] 0.0, 128
        %994 = vxpose.xlu0.b32.cont [8/16] 0.0, 128
        %995 = vxpose.xlu0.b32.cont [9/16] 0.0, 128
        %996 = vxpose.xlu0.b32.cont [10/16] 0.0, 128
        %997 = vxpose.xlu0.b32.cont [11/16] 0.0, 128
        %998 = vxpose.xlu0.b32.cont [12/16] 0.0, 128
        %999 = vxpose.xlu0.b32.cont [13/16] 0.0, 128
        %1000 = vxpose.xlu0.b32.cont [14/16] 0.0, 128
        %1001 = vxpose.xlu0.b32.cont [15/16] 0.0, 128
        %1002 = vxpose.xlu0.b32.end [16/16] 0.0, 128
        %v1003 = vpop.trf.xlu0
        %v1004 = vpop.trf.xlu0
        %v1005 = vpop.trf.xlu0
        %v1006 = vpop.trf.xlu0
        %v1007 = vpop.trf.xlu0
        %v1008 = vpop.trf.xlu0
        %v1009 = vpop.trf.xlu0
        %v1010 = vpop.trf.xlu0
        %v1011 = vpop.trf.xlu0
        %v1012 = vpop.trf.xlu0
        %v1013 = vpop.trf.xlu0
        %v1014 = vpop.trf.xlu0
        %v1015 = vpop.trf.xlu0
        %v1016 = vpop.trf.xlu0
        %v1017 = vpop.trf.xlu0
        %v1018 = vpop.trf.xlu0
        %v1020 = vsel %vm688, %v1003, 0
        %1022 = vmatprep.subr.mxu0 0.0
        %1023 = vmatpush1.msra.mxu0 0.0
        %1024 = vmatprep.subr.mxu0 0.0
        %1025 = vmatpush1.msra.mxu0 0.0
        %1026 = vmatprep.subr.mxu0 0.0
        %1027 = vmatpush1.msra.mxu0 0.0
        %1028 = vmatprep.subr.mxu0 0.0
        %1029 = vmatpush1.msra.mxu0 0.0
        %1030 = vmatprep.subr.mxu0 0.0
        %1031 = vmatpush1.msra.mxu0 0.0
        %1032 = vmatprep.subr.mxu0 0.0
        %1033 = vmatpush1.msra.mxu0 0.0
        %1034 = vmatprep.subr.mxu0 0.0
        %1035 = vmatpush1.msra.mxu0 0.0
        %1036 = vmatprep.subr.mxu0 0.0
        %1037 = vmatpush1.msra.mxu0 0.0
        %1038 = vmatprep.subr.mxu0 0.0
        %1039 = vmatpush1.msra.mxu0 0.0
        %1040 = vmatprep.subr.mxu0 0.0
        %1041 = vmatpush1.msra.mxu0 0.0
        %1042 = vmatprep.subr.mxu0 0.0
        %1043 = vmatpush1.msra.mxu0 0.0
        %1044 = vmatprep.subr.mxu0 0.0
        %1045 = vmatpush1.msra.mxu0 0.0
        %1046 = vmatprep.subr.mxu0 0.0
        %1047 = vmatpush1.msra.mxu0 0.0
        %1048 = vmatprep.subr.mxu0 0.0
        %1049 = vmatpush1.msra.mxu0 0.0
        %1050 = vmatprep.subr.mxu0 0.0
        %1051 = vmatpush1.msra.mxu0 0.0
        %1052 = vmatprep.subr.mxu0 0.0
        %1053 = vmatpush1.msra.mxu0 %v986
        %1054 = vmatprep.subr.mxu0 0.0
        %1055 = vmatpush2.msra.mxu0 0.0
        %1056 = vmatprep.subr.mxu0 0.0
        %1057 = vmatpush2.msra.mxu0 0.0
        %1058 = vmatprep.subr.mxu0 0.0
        %1059 = vmatpush2.msra.mxu0 0.0
        %1060 = vmatprep.subr.mxu0 0.0
        %1061 = vmatpush2.msra.mxu0 0.0
        %1062 = vmatprep.subr.mxu0 0.0
        %1063 = vmatpush2.msra.mxu0 0.0
        %1064 = vmatprep.subr.mxu0 0.0
        %1065 = vmatpush2.msra.mxu0 0.0
        %1066 = vmatprep.subr.mxu0 0.0
        %1067 = vmatpush2.msra.mxu0 0.0
        %1068 = vmatprep.subr.mxu0 0.0
        %1069 = vmatpush2.msra.mxu0 0.0
        %1070 = vmatprep.subr.mxu0 0.0
        %1071 = vmatpush2.msra.mxu0 0.0
        %1072 = vmatprep.subr.mxu0 0.0
        %1073 = vmatpush2.msra.mxu0 0.0
        %1074 = vmatprep.subr.mxu0 0.0
        %1075 = vmatpush2.msra.mxu0 0.0
        %1076 = vmatprep.subr.mxu0 0.0
        %1077 = vmatpush2.msra.mxu0 0.0
        %1078 = vmatprep.subr.mxu0 0.0
        %1079 = vmatpush2.msra.mxu0 0.0
        %1080 = vmatprep.subr.mxu0 0.0
        %1081 = vmatpush2.msra.mxu0 0.0
        %1082 = vmatprep.subr.mxu0 0.0
        %1083 = vmatpush2.msra.mxu0 0.0
        %1084 = vmatprep.subr.mxu0 0.0
        %1085 = vmatpush2.msra.mxu0 0.0
        %1086 = vmatprep.mubr.f32.mxu0 0.0
        %1087 = vmatmul.mubr.f32.gmra.mxu0 %v1020
        %v1088 = vpop.f32.mrf.mxu0
        %v1089 = vadd.f32 0.0, %v1088
        %v1090 = vpop.f32.mrf.mxu0
        %1091 = vdwg.mxu0
        %v1092 = vld [vmem:[#allocation3] sm:$0xff]
        %1094 = vrot.lane.b32.xlu0 %v1089, 8
        %v1095 = vpop.permute.xlu0 %1094
        %v1097 = vadd.f32 %v1092, %v1095
        %vm1098 = vcmask 130112
        %1099 = vst.msk [vmem:[#allocation3] sm:$0xff] %vm1098, %v1097
        %v1100 = vld [vmem:[#allocation4] sm:$0xff]
        %1101 = vrot.lane.b32.xlu0 %v1089, 121
        %v1102 = vpop.permute.xlu0 %1101
        %v1104 = vadd.f32 %v1100, %v1102
        %vm1105 = vcmask 15368
        %1106 = vst.msk [vmem:[#allocation4] sm:$0xff] %vm1105, %v1104
        %1107 = vrot.lane.b32.xlu0 %v607, 112
        %v1108 = vpop.permute.xlu0 %1107
        %1109 = vrot.lane.b32.xlu0 %v687, 112
        %v1110 = vpop.permute.xlu0 %1109
        %v1111 = vsel %vm688, %v1108, 0
        %v1113 = vsel %vm688, %v1110, 0
        %1115 = vmatprep.subr.mxu0 0.0
        %1116 = vmatpush1.xpose.msra.mxu0 0.0
        %1117 = vmatprep.subr.mxu0 0.0
        %1118 = vmatpush1.xpose.msra.mxu0 0.0
        %1119 = vmatprep.subr.mxu0 0.0
        %1120 = vmatpush1.xpose.msra.mxu0 0.0
        %1121 = vmatprep.subr.mxu0 0.0
        %1122 = vmatpush1.xpose.msra.mxu0 0.0
        %1123 = vmatprep.subr.mxu0 0.0
        %1124 = vmatpush1.xpose.msra.mxu0 0.0
        %1125 = vmatprep.subr.mxu0 0.0
        %1126 = vmatpush1.xpose.msra.mxu0 0.0
        %1127 = vmatprep.subr.mxu0 0.0
        %1128 = vmatpush1.xpose.msra.mxu0 0.0
        %1129 = vmatprep.subr.mxu0 0.0
        %1130 = vmatpush1.xpose.msra.mxu0 0.0
        %1131 = vmatprep.subr.mxu0 0.0
        %1132 = vmatpush1.xpose.msra.mxu0 0.0
        %1133 = vmatprep.subr.mxu0 0.0
        %1134 = vmatpush1.xpose.msra.mxu0 0.0
        %1135 = vmatprep.subr.mxu0 0.0
        %1136 = vmatpush1.xpose.msra.mxu0 0.0
        %1137 = vmatprep.subr.mxu0 0.0
        %1138 = vmatpush1.xpose.msra.mxu0 0.0
        %1139 = vmatprep.subr.mxu0 0.0
        %1140 = vmatpush1.xpose.msra.mxu0 0.0
        %1141 = vmatprep.subr.mxu0 0.0
        %1142 = vmatpush1.xpose.msra.mxu0 0.0
        %1143 = vmatprep.subr.mxu0 0.0
        %1144 = vmatpush1.xpose.msra.mxu0 0.0
        %1145 = vmatprep.subr.mxu0 0.0
        %1146 = vmatpush1.xpose.msra.mxu0 %v1113
        %1147 = vmatprep.subr.mxu0 0.0
        %1148 = vmatpush2.xpose.msra.mxu0 0.0
        %1149 = vmatprep.subr.mxu0 0.0
        %1150 = vmatpush2.xpose.msra.mxu0 0.0
        %1151 = vmatprep.subr.mxu0 0.0
        %1152 = vmatpush2.xpose.msra.mxu0 0.0
        %1153 = vmatprep.subr.mxu0 0.0
        %1154 = vmatpush2.xpose.msra.mxu0 0.0
        %1155 = vmatprep.subr.mxu0 0.0
        %1156 = vmatpush2.xpose.msra.mxu0 0.0
        %1157 = vmatprep.subr.mxu0 0.0
        %1158 = vmatpush2.xpose.msra.mxu0 0.0
        %1159 = vmatprep.subr.mxu0 0.0
        %1160 = vmatpush2.xpose.msra.mxu0 0.0
        %1161 = vmatprep.subr.mxu0 0.0
        %1162 = vmatpush2.xpose.msra.mxu0 0.0
        %1163 = vmatprep.subr.mxu0 0.0
        %1164 = vmatpush2.xpose.msra.mxu0 0.0
        %1165 = vmatprep.subr.mxu0 0.0
        %1166 = vmatpush2.xpose.msra.mxu0 0.0
        %1167 = vmatprep.subr.mxu0 0.0
        %1168 = vmatpush2.xpose.msra.mxu0 0.0
        %1169 = vmatprep.subr.mxu0 0.0
        %1170 = vmatpush2.xpose.msra.mxu0 0.0
        %1171 = vmatprep.subr.mxu0 0.0
        %1172 = vmatpush2.xpose.msra.mxu0 0.0
        %1173 = vmatprep.subr.mxu0 0.0
        %1174 = vmatpush2.xpose.msra.mxu0 0.0
        %1175 = vmatprep.subr.mxu0 0.0
        %1176 = vmatpush2.xpose.msra.mxu0 0.0
        %1177 = vmatprep.subr.mxu0 0.0
        %1178 = vmatpush2.xpose.msra.mxu0 0.0
        %1179 = vmatprep.mubr.f32.mxu0 0.0
        %1180 = vmatmul.mubr.f32.gmra.mxu0 %v1111
        %v1181 = vpop.f32.mrf.mxu0
        %v1182 = vadd.f32 0.0, %v1181
        %v1183 = vpop.f32.mrf.mxu0
        %1184 = vdwg.mxu0
        %v1185 = vsel %vm688, %v1182, -inf
        %1186 = vmax.xlane.f32.xlu0 %v1185
        %v1187 = vpop.xlane.xlu0 %1186
        %v1188 = vsub.f32 %v1182, %v1187
        %v1189 = vmul.f32 %v1188, 1.442695
        %v1190 = vpow.pop %v1189
        %v1191 = vsel %vm688, %v1190, 0.0
        %1192 = vadd.xlane.f32.xlu0 %v1191
        %v1193 = vpop.xlane.xlu0 %1192
        %v1194 = vrcp.pop %v1193
        %1195 = vrot.lane.b32.xlu0 %v684, 112
        %v1196 = vpop.permute.xlu0 %1195
        %v1198 = vsel %vm688, %v1196, 1.0
        %v1199 = vmul.f32 %v1198, %v1194
        %1200 = vxpose.xlu0.b32.start [1/16] %v1190, 128
        %1201 = vxpose.xlu0.b32.cont [2/16] 0.0, 128
        %1202 = vxpose.xlu0.b32.cont [3/16] 0.0, 128
        %1203 = vxpose.xlu0.b32.cont [4/16] 0.0, 128
        %1204 = vxpose.xlu0.b32.cont [5/16] 0.0, 128
        %1205 = vxpose.xlu0.b32.cont [6/16] 0.0, 128
        %1206 = vxpose.xlu0.b32.cont [7/16] 0.0, 128
        %1207 = vxpose.xlu0.b32.cont [8/16] 0.0, 128
        %1208 = vxpose.xlu0.b32.cont [9/16] 0.0, 128
        %1209 = vxpose.xlu0.b32.cont [10/16] 0.0, 128
        %1210 = vxpose.xlu0.b32.cont [11/16] 0.0, 128
        %1211 = vxpose.xlu0.b32.cont [12/16] 0.0, 128
        %1212 = vxpose.xlu0.b32.cont [13/16] 0.0, 128
        %1213 = vxpose.xlu0.b32.cont [14/16] 0.0, 128
        %1214 = vxpose.xlu0.b32.cont [15/16] 0.0, 128
        %1215 = vxpose.xlu0.b32.end [16/16] 0.0, 128
        %v1216 = vpop.trf.xlu0
        %v1217 = vpop.trf.xlu0
        %v1218 = vpop.trf.xlu0
        %v1219 = vpop.trf.xlu0
        %v1220 = vpop.trf.xlu0
        %v1221 = vpop.trf.xlu0
        %v1222 = vpop.trf.xlu0
        %v1223 = vpop.trf.xlu0
        %v1224 = vpop.trf.xlu0
        %v1225 = vpop.trf.xlu0
        %v1226 = vpop.trf.xlu0
        %v1227 = vpop.trf.xlu0
        %v1228 = vpop.trf.xlu0
        %v1229 = vpop.trf.xlu0
        %v1230 = vpop.trf.xlu0
        %v1231 = vpop.trf.xlu0
        %v1233 = vsel %vm688, %v1216, 0
        %1235 = vmatprep.subr.mxu0 0.0
        %1236 = vmatpush1.msra.mxu0 0.0
        %1237 = vmatprep.subr.mxu0 0.0
        %1238 = vmatpush1.msra.mxu0 0.0
        %1239 = vmatprep.subr.mxu0 0.0
        %1240 = vmatpush1.msra.mxu0 0.0
        %1241 = vmatprep.subr.mxu0 0.0
        %1242 = vmatpush1.msra.mxu0 0.0
        %1243 = vmatprep.subr.mxu0 0.0
        %1244 = vmatpush1.msra.mxu0 0.0
        %1245 = vmatprep.subr.mxu0 0.0
        %1246 = vmatpush1.msra.mxu0 0.0
        %1247 = vmatprep.subr.mxu0 0.0
        %1248 = vmatpush1.msra.mxu0 0.0
        %1249 = vmatprep.subr.mxu0 0.0
        %1250 = vmatpush1.msra.mxu0 0.0
        %1251 = vmatprep.subr.mxu0 0.0
        %1252 = vmatpush1.msra.mxu0 0.0
        %1253 = vmatprep.subr.mxu0 0.0
        %1254 = vmatpush1.msra.mxu0 0.0
        %1255 = vmatprep.subr.mxu0 0.0
        %1256 = vmatpush1.msra.mxu0 0.0
        %1257 = vmatprep.subr.mxu0 0.0
        %1258 = vmatpush1.msra.mxu0 0.0
        %1259 = vmatprep.subr.mxu0 0.0
        %1260 = vmatpush1.msra.mxu0 0.0
        %1261 = vmatprep.subr.mxu0 0.0
        %1262 = vmatpush1.msra.mxu0 0.0
        %1263 = vmatprep.subr.mxu0 0.0
        %1264 = vmatpush1.msra.mxu0 0.0
        %1265 = vmatprep.subr.mxu0 0.0
        %1266 = vmatpush1.msra.mxu0 %v1199
        %1267 = vmatprep.subr.mxu0 0.0
        %1268 = vmatpush2.msra.mxu0 0.0
        %1269 = vmatprep.subr.mxu0 0.0
        %1270 = vmatpush2.msra.mxu0 0.0
        %1271 = vmatprep.subr.mxu0 0.0
        %1272 = vmatpush2.msra.mxu0 0.0
        %1273 = vmatprep.subr.mxu0 0.0
        %1274 = vmatpush2.msra.mxu0 0.0
        %1275 = vmatprep.subr.mxu0 0.0
        %1276 = vmatpush2.msra.mxu0 0.0
        %1277 = vmatprep.subr.mxu0 0.0
        %1278 = vmatpush2.msra.mxu0 0.0
        %1279 = vmatprep.subr.mxu0 0.0
        %1280 = vmatpush2.msra.mxu0 0.0
        %1281 = vmatprep.subr.mxu0 0.0
        %1282 = vmatpush2.msra.mxu0 0.0
        %1283 = vmatprep.subr.mxu0 0.0
        %1284 = vmatpush2.msra.mxu0 0.0
        %1285 = vmatprep.subr.mxu0 0.0
        %1286 = vmatpush2.msra.mxu0 0.0
        %1287 = vmatprep.subr.mxu0 0.0
        %1288 = vmatpush2.msra.mxu0 0.0
        %1289 = vmatprep.subr.mxu0 0.0
        %1290 = vmatpush2.msra.mxu0 0.0
        %1291 = vmatprep.subr.mxu0 0.0
        %1292 = vmatpush2.msra.mxu0 0.0
        %1293 = vmatprep.subr.mxu0 0.0
        %1294 = vmatpush2.msra.mxu0 0.0
        %1295 = vmatprep.subr.mxu0 0.0
        %1296 = vmatpush2.msra.mxu0 0.0
        %1297 = vmatprep.subr.mxu0 0.0
        %1298 = vmatpush2.msra.mxu0 0.0
        %1299 = vmatprep.mubr.f32.mxu0 0.0
        %1300 = vmatmul.mubr.f32.gmra.mxu0 %v1233
        %v1301 = vpop.f32.mrf.mxu0
        %v1302 = vadd.f32 0.0, %v1301
        %v1303 = vpop.f32.mrf.mxu0
        %1304 = vdwg.mxu0
        %v1305 = vld [vmem:[#allocation3] sm:$0xff]
        %1307 = vrot.lane.b32.xlu0 %v1302, 16
        %v1308 = vpop.permute.xlu0 %1307
        %v1310 = vadd.f32 %v1305, %v1308
        %vm1311 = vcmask 195712
        %1312 = vst.msk [vmem:[#allocation3] sm:$0xff] %vm1311, %v1310
        %v1313 = vld [vmem:[#allocation4] sm:$0xff]
        %1314 = vrot.lane.b32.xlu0 %v1302, 122
        %v1315 = vpop.permute.xlu0 %1314
        %v1317 = vadd.f32 %v1313, %v1315
        %vm1318 = vcmask 23568
        %1319 = vst.msk [vmem:[#allocation4] sm:$0xff] %vm1318, %v1317
        %1320 = vrot.lane.b32.xlu0 %v607, 104
        %v1321 = vpop.permute.xlu0 %1320
        %1322 = vrot.lane.b32.xlu0 %v687, 104
        %v1323 = vpop.permute.xlu0 %1322
        %v1324 = vsel %vm688, %v1321, 0
        %v1326 = vsel %vm688, %v1323, 0
        %1328 = vmatprep.subr.mxu0 0.0
        %1329 = vmatpush1.xpose.msra.mxu0 0.0
        %1330 = vmatprep.subr.mxu0 0.0
        %1331 = vmatpush1.xpose.msra.mxu0 0.0
        %1332 = vmatprep.subr.mxu0 0.0
        %1333 = vmatpush1.xpose.msra.mxu0 0.0
        %1334 = vmatprep.subr.mxu0 0.0
        %1335 = vmatpush1.xpose.msra.mxu0 0.0
        %1336 = vmatprep.subr.mxu0 0.0
        %1337 = vmatpush1.xpose.msra.mxu0 0.0
        %1338 = vmatprep.subr.mxu0 0.0
        %1339 = vmatpush1.xpose.msra.mxu0 0.0
        %1340 = vmatprep.subr.mxu0 0.0
        %1341 = vmatpush1.xpose.msra.mxu0 0.0
        %1342 = vmatprep.subr.mxu0 0.0
        %1343 = vmatpush1.xpose.msra.mxu0 0.0
        %1344 = vmatprep.subr.mxu0 0.0
        %1345 = vmatpush1.xpose.msra.mxu0 0.0
        %1346 = vmatprep.subr.mxu0 0.0
        %1347 = vmatpush1.xpose.msra.mxu0 0.0
        %1348 = vmatprep.subr.mxu0 0.0
        %1349 = vmatpush1.xpose.msra.mxu0 0.0
        %1350 = vmatprep.subr.mxu0 0.0
        %1351 = vmatpush1.xpose.msra.mxu0 0.0
        %1352 = vmatprep.subr.mxu0 0.0
        %1353 = vmatpush1.xpose.msra.mxu0 0.0
        %1354 = vmatprep.subr.mxu0 0.0
        %1355 = vmatpush1.xpose.msra.mxu0 0.0
        %1356 = vmatprep.subr.mxu0 0.0
        %1357 = vmatpush1.xpose.msra.mxu0 0.0
        %1358 = vmatprep.subr.mxu0 0.0
        %1359 = vmatpush1.xpose.msra.mxu0 %v1326
        %1360 = vmatprep.subr.mxu0 0.0
        %1361 = vmatpush2.xpose.msra.mxu0 0.0
        %1362 = vmatprep.subr.mxu0 0.0
        %1363 = vmatpush2.xpose.msra.mxu0 0.0
        %1364 = vmatprep.subr.mxu0 0.0
        %1365 = vmatpush2.xpose.msra.mxu0 0.0
        %1366 = vmatprep.subr.mxu0 0.0
        %1367 = vmatpush2.xpose.msra.mxu0 0.0
        %1368 = vmatprep.subr.mxu0 0.0
        %1369 = vmatpush2.xpose.msra.mxu0 0.0
        %1370 = vmatprep.subr.mxu0 0.0
        %1371 = vmatpush2.xpose.msra.mxu0 0.0
        %1372 = vmatprep.subr.mxu0 0.0
        %1373 = vmatpush2.xpose.msra.mxu0 0.0
        %1374 = vmatprep.subr.mxu0 0.0
        %1375 = vmatpush2.xpose.msra.mxu0 0.0
        %1376 = vmatprep.subr.mxu0 0.0
        %1377 = vmatpush2.xpose.msra.mxu0 0.0
        %1378 = vmatprep.subr.mxu0 0.0
        %1379 = vmatpush2.xpose.msra.mxu0 0.0
        %1380 = vmatprep.subr.mxu0 0.0
        %1381 = vmatpush2.xpose.msra.mxu0 0.0
        %1382 = vmatprep.subr.mxu0 0.0
        %1383 = vmatpush2.xpose.msra.mxu0 0.0
        %1384 = vmatprep.subr.mxu0 0.0
        %1385 = vmatpush2.xpose.msra.mxu0 0.0
        %1386 = vmatprep.subr.mxu0 0.0
        %1387 = vmatpush2.xpose.msra.mxu0 0.0
        %1388 = vmatprep.subr.mxu0 0.0
        %1389 = vmatpush2.xpose.msra.mxu0 0.0
        %1390 = vmatprep.subr.mxu0 0.0
        %1391 = vmatpush2.xpose.msra.mxu0 0.0
        %1392 = vmatprep.mubr.f32.mxu0 0.0
        %1393 = vmatmul.mubr.f32.gmra.mxu0 %v1324
        %v1394 = vpop.f32.mrf.mxu0
        %v1395 = vadd.f32 0.0, %v1394
        %v1396 = vpop.f32.mrf.mxu0
        %1397 = vdwg.mxu0
        %v1398 = vsel %vm688, %v1395, -inf
        %1399 = vmax.xlane.f32.xlu0 %v1398
        %v1400 = vpop.xlane.xlu0 %1399
        %v1401 = vsub.f32 %v1395, %v1400
        %v1402 = vmul.f32 %v1401, 1.442695
        %v1403 = vpow.pop %v1402
        %v1404 = vsel %vm688, %v1403, 0.0
        %1405 = vadd.xlane.f32.xlu0 %v1404
        %v1406 = vpop.xlane.xlu0 %1405
        %v1407 = vrcp.pop %v1406
        %1408 = vrot.lane.b32.xlu0 %v684, 104
        %v1409 = vpop.permute.xlu0 %1408
        %v1411 = vsel %vm688, %v1409, 1.0
        %v1412 = vmul.f32 %v1411, %v1407
        %1413 = vxpose.xlu0.b32.start [1/16] %v1403, 128
        %1414 = vxpose.xlu0.b32.cont [2/16] 0.0, 128
        %1415 = vxpose.xlu0.b32.cont [3/16] 0.0, 128
        %1416 = vxpose.xlu0.b32.cont [4/16] 0.0, 128
        %1417 = vxpose.xlu0.b32.cont [5/16] 0.0, 128
        %1418 = vxpose.xlu0.b32.cont [6/16] 0.0, 128
        %1419 = vxpose.xlu0.b32.cont [7/16] 0.0, 128
        %1420 = vxpose.xlu0.b32.cont [8/16] 0.0, 128
        %1421 = vxpose.xlu0.b32.cont [9/16] 0.0, 128
        %1422 = vxpose.xlu0.b32.cont [10/16] 0.0, 128
        %1423 = vxpose.xlu0.b32.cont [11/16] 0.0, 128
        %1424 = vxpose.xlu0.b32.cont [12/16] 0.0, 128
        %1425 = vxpose.xlu0.b32.cont [13/16] 0.0, 128
        %1426 = vxpose.xlu0.b32.cont [14/16] 0.0, 128
        %1427 = vxpose.xlu0.b32.cont [15/16] 0.0, 128
        %1428 = vxpose.xlu0.b32.end [16/16] 0.0, 128
        %v1429 = vpop.trf.xlu0
        %v1430 = vpop.trf.xlu0
        %v1431 = vpop.trf.xlu0
        %v1432 = vpop.trf.xlu0
        %v1433 = vpop.trf.xlu0
        %v1434 = vpop.trf.xlu0
        %v1435 = vpop.trf.xlu0
        %v1436 = vpop.trf.xlu0
        %v1437 = vpop.trf.xlu0
        %v1438 = vpop.trf.xlu0
        %v1439 = vpop.trf.xlu0
        %v1440 = vpop.trf.xlu0
        %v1441 = vpop.trf.xlu0
        %v1442 = vpop.trf.xlu0
        %v1443 = vpop.trf.xlu0
        %v1444 = vpop.trf.xlu0
        %v1446 = vsel %vm688, %v1429, 0
        %1448 = vmatprep.subr.mxu0 0.0
        %1449 = vmatpush1.msra.mxu0 0.0
        %1450 = vmatprep.subr.mxu0 0.0
        %1451 = vmatpush1.msra.mxu0 0.0
        %1452 = vmatprep.subr.mxu0 0.0
        %1453 = vmatpush1.msra.mxu0 0.0
        %1454 = vmatprep.subr.mxu0 0.0
        %1455 = vmatpush1.msra.mxu0 0.0
        %1456 = vmatprep.subr.mxu0 0.0
        %1457 = vmatpush1.msra.mxu0 0.0
        %1458 = vmatprep.subr.mxu0 0.0
        %1459 = vmatpush1.msra.mxu0 0.0
        %1460 = vmatprep.subr.mxu0 0.0
        %1461 = vmatpush1.msra.mxu0 0.0
        %1462 = vmatprep.subr.mxu0 0.0
        %1463 = vmatpush1.msra.mxu0 0.0
        %1464 = vmatprep.subr.mxu0 0.0
        %1465 = vmatpush1.msra.mxu0 0.0
        %1466 = vmatprep.subr.mxu0 0.0
        %1467 = vmatpush1.msra.mxu0 0.0
        %1468 = vmatprep.subr.mxu0 0.0
        %1469 = vmatpush1.msra.mxu0 0.0
        %1470 = vmatprep.subr.mxu0 0.0
        %1471 = vmatpush1.msra.mxu0 0.0
        %1472 = vmatprep.subr.mxu0 0.0
        %1473 = vmatpush1.msra.mxu0 0.0
        %1474 = vmatprep.subr.mxu0 0.0
        %1475 = vmatpush1.msra.mxu0 0.0
        %1476 = vmatprep.subr.mxu0 0.0
        %1477 = vmatpush1.msra.mxu0 0.0
        %1478 = vmatprep.subr.mxu0 0.0
        %1479 = vmatpush1.msra.mxu0 %v1412
        %1480 = vmatprep.subr.mxu0 0.0
        %1481 = vmatpush2.msra.mxu0 0.0
        %1482 = vmatprep.subr.mxu0 0.0
        %1483 = vmatpush2.msra.mxu0 0.0
        %1484 = vmatprep.subr.mxu0 0.0
        %1485 = vmatpush2.msra.mxu0 0.0
        %1486 = vmatprep.subr.mxu0 0.0
        %1487 = vmatpush2.msra.mxu0 0.0
        %1488 = vmatprep.subr.mxu0 0.0
        %1489 = vmatpush2.msra.mxu0 0.0
        %1490 = vmatprep.subr.mxu0 0.0
        %1491 = vmatpush2.msra.mxu0 0.0
        %1492 = vmatprep.subr.mxu0 0.0
        %1493 = vmatpush2.msra.mxu0 0.0
        %1494 = vmatprep.subr.mxu0 0.0
        %1495 = vmatpush2.msra.mxu0 0.0
        %1496 = vmatprep.subr.mxu0 0.0
        %1497 = vmatpush2.msra.mxu0 0.0
        %1498 = vmatprep.subr.mxu0 0.0
        %1499 = vmatpush2.msra.mxu0 0.0
        %1500 = vmatprep.subr.mxu0 0.0
        %1501 = vmatpush2.msra.mxu0 0.0
        %1502 = vmatprep.subr.mxu0 0.0
        %1503 = vmatpush2.msra.mxu0 0.0
        %1504 = vmatprep.subr.mxu0 0.0
        %1505 = vmatpush2.msra.mxu0 0.0
        %1506 = vmatprep.subr.mxu0 0.0
        %1507 = vmatpush2.msra.mxu0 0.0
        %1508 = vmatprep.subr.mxu0 0.0
        %1509 = vmatpush2.msra.mxu0 0.0
        %1510 = vmatprep.subr.mxu0 0.0
        %1511 = vmatpush2.msra.mxu0 0.0
        %1512 = vmatprep.mubr.f32.mxu0 0.0
        %1513 = vmatmul.mubr.f32.gmra.mxu0 %v1446
        %v1514 = vpop.f32.mrf.mxu0
        %v1515 = vadd.f32 0.0, %v1514
        %v1516 = vpop.f32.mrf.mxu0
        %1517 = vdwg.mxu0
        %v1518 = vld [vmem:[#allocation3] sm:$0xff]
        %1520 = vrot.lane.b32.xlu0 %v1515, 24
        %v1521 = vpop.permute.xlu0 %1520
        %v1523 = vadd.f32 %v1518, %v1521
        %vm1524 = vcmask 261312
        %1525 = vst.msk [vmem:[#allocation3] sm:$0xff] %vm1524, %v1523
        %v1526 = vld [vmem:[#allocation4] sm:$0xff]
        %1527 = vrot.lane.b32.xlu0 %v1515, 123
        %v1528 = vpop.permute.xlu0 %1527
        %v1530 = vadd.f32 %v1526, %v1528
        %vm1531 = vcmask 31768
        %1532 = vst.msk [vmem:[#allocation4] sm:$0xff] %vm1531, %v1530
        %p1533 = scmp.eq.s32.totalorder %s34, 1
        // Predicated region
        $region81: #{tpu_custom_call.1} parent=47 // pred_check
          %p1534 = pneg %p1533
        $region82: #{tpu_custom_call.1} parent=47 // pred_check_branch
          %1536 = sbr.rel (%p1534) target = $region84
        $region83: #{tpu_custom_call.1} parent=47 // pred_region
          %v1537 = vld [vmem:[#allocation4] sm:$0xff]
          %v1538 = vadd.f32 %v1537, 1.6e-09
          %v1539 = vrcp.pop %v1538
          %v1540 = vld [vmem:[#allocation3] sm:$0xff]
          %1542 = vset.pattern.permute.xlu0 0
          %1543 = vperm.xlu0 %1542, %v1539
          %v1544 = vpop.permute.xlu0 %1543
          %v1546 = vmul.f32 %v1540, %v1544
          %1547 = vst.msk [vmem:[#allocation3] sm:$0xff] %vm688, %v1546
          %v1548 = vld [vmem:[#allocation4] sm:$0xff]
          %v1549 = vadd.f32 %v1548, 1.6e-09
          %v1550 = vrcp.pop %v1549
          %v1551 = vld [vmem:[#allocation3] sm:$0xff]
          %1553 = vset.pattern.permute.xlu0 1
          %1554 = vperm.xlu0 %1553, %v1550
          %v1555 = vpop.permute.xlu0 %1554
          %v1557 = vmul.f32 %v1551, %v1555
          %1558 = vst.msk [vmem:[#allocation3] sm:$0xff] %vm1098, %v1557
          %v1559 = vld [vmem:[#allocation4] sm:$0xff]
          %v1560 = vadd.f32 %v1559, 1.6e-09
          %v1561 = vrcp.pop %v1560
          %v1562 = vld [vmem:[#allocation3] sm:$0xff]
          %1564 = vset.pattern.permute.xlu0 2
          %1565 = vperm.xlu0 %1564, %v1561
          %v1566 = vpop.permute.xlu0 %1565
          %v1568 = vmul.f32 %v1562, %v1566
          %1569 = vst.msk [vmem:[#allocation3] sm:$0xff] %vm1311, %v1568
          %v1570 = vld [vmem:[#allocation4] sm:$0xff]
          %v1571 = vadd.f32 %v1570, 1.6e-09
          %v1572 = vrcp.pop %v1571
          %v1573 = vld [vmem:[#allocation3] sm:$0xff]
          %1575 = vset.pattern.permute.xlu0 3
          %1576 = vperm.xlu0 %1575, %v1572
          %v1577 = vpop.permute.xlu0 %1576
          %v1579 = vmul.f32 %v1573, %v1577
          %1580 = vst.msk [vmem:[#allocation3] sm:$0xff] %vm1524, %v1579
          %v1581 = vld [vmem:[#allocation3] sm:$0xff]
          %v1582 = vld [vmem:[#allocation16] sm:$0xff]
          %v1583 = vld [vmem:[#allocation16 + $0x8] sm:$0xff]
          %v1584 = vld [vmem:[#allocation16 + $0x10] sm:$0xff]
          %v1585 = vld [vmem:[#allocation16 + $0x18] sm:$0xff]
          %v1587 = vsel %vm536, %v1581, 0
          %1589 = vmatprep.subr.mxu0 0.0
          %1590 = vmatpush1.msra.mxu0 0.0
          %1591 = vmatprep.subr.mxu0 0.0
          %1592 = vmatpush1.msra.mxu0 0.0
          %1593 = vmatprep.subr.mxu0 0.0
          %1594 = vmatpush1.msra.mxu0 0.0
          %1595 = vmatprep.subr.mxu0 0.0
          %1596 = vmatpush1.msra.mxu0 0.0
          %1597 = vmatprep.subr.mxu0 0.0
          %1598 = vmatpush1.msra.mxu0 0.0
          %1599 = vmatprep.subr.mxu0 0.0
          %1600 = vmatpush1.msra.mxu0 0.0
          %1601 = vmatprep.subr.mxu0 0.0
          %1602 = vmatpush1.msra.mxu0 0.0
          %1603 = vmatprep.subr.mxu0 0.0
          %1604 = vmatpush1.msra.mxu0 0.0
          %1605 = vmatprep.subr.mxu0 0.0
          %1606 = vmatpush1.msra.mxu0 0.0
          %1607 = vmatprep.subr.mxu0 0.0
          %1608 = vmatpush1.msra.mxu0 0.0
          %1609 = vmatprep.subr.mxu0 0.0
          %1610 = vmatpush1.msra.mxu0 0.0
          %1611 = vmatprep.subr.mxu0 0.0
          %1612 = vmatpush1.msra.mxu0 0.0
          %1613 = vmatprep.subr.mxu0 0.0
          %1614 = vmatpush1.msra.mxu0 %v1585
          %1615 = vmatprep.subr.mxu0 0.0
          %1616 = vmatpush1.msra.mxu0 %v1584
          %1617 = vmatprep.subr.mxu0 0.0
          %1618 = vmatpush1.msra.mxu0 %v1583
          %1619 = vmatprep.subr.mxu0 0.0
          %1620 = vmatpush1.msra.mxu0 %v1582
          %1621 = vmatprep.subr.mxu0 0.0
          %1622 = vmatpush2.msra.mxu0 0.0
          %1623 = vmatprep.subr.mxu0 0.0
          %1624 = vmatpush2.msra.mxu0 0.0
          %1625 = vmatprep.subr.mxu0 0.0
          %1626 = vmatpush2.msra.mxu0 0.0
          %1627 = vmatprep.subr.mxu0 0.0
          %1628 = vmatpush2.msra.mxu0 0.0
          %1629 = vmatprep.subr.mxu0 0.0
          %1630 = vmatpush2.msra.mxu0 0.0
          %1631 = vmatprep.subr.mxu0 0.0
          %1632 = vmatpush2.msra.mxu0 0.0
          %1633 = vmatprep.subr.mxu0 0.0
          %1634 = vmatpush2.msra.mxu0 0.0
          %1635 = vmatprep.subr.mxu0 0.0
          %1636 = vmatpush2.msra.mxu0 0.0
          %1637 = vmatprep.subr.mxu0 0.0
          %1638 = vmatpush2.msra.mxu0 0.0
          %1639 = vmatprep.subr.mxu0 0.0
          %1640 = vmatpush2.msra.mxu0 0.0
          %1641 = vmatprep.subr.mxu0 0.0
          %1642 = vmatpush2.msra.mxu0 0.0
          %1643 = vmatprep.subr.mxu0 0.0
          %1644 = vmatpush2.msra.mxu0 0.0
          %1645 = vmatprep.subr.mxu0 0.0
          %1646 = vmatpush2.msra.mxu0 0.0
          %1647 = vmatprep.subr.mxu0 0.0
          %1648 = vmatpush2.msra.mxu0 0.0
          %1649 = vmatprep.subr.mxu0 0.0
          %1650 = vmatpush2.msra.mxu0 0.0
          %1651 = vmatprep.subr.mxu0 0.0
          %1652 = vmatpush2.msra.mxu0 0.0
          %1653 = vmatprep.mubr.f32.mxu0 0.0
          %1654 = vmatmul.mubr.f32.gmra.mxu0 %v1587
          %v1655 = vpop.f32.mrf.mxu0
          %v1656 = vadd.f32 0.0, %v1655
          %v1657 = vpop.f32.mrf.mxu0
          %1658 = vdwg.mxu0
          %1659 = vst.msk [vmem:[%s442] sm:$0xff] %vm536, %v1656
        $region84: #{tpu_custom_call.1} parent=47 // pred_fallthru
          _
        %s1660 = sand.u32 %s215, 1
        %s1661 = scalar_lea.sflag [#allocation7], %s1660
        %s1662 = sand.u32 %s215, 1
        %s1663 = smul.addr %s1662, 8
        %s1664 = scalar_lea.vmem [#allocation17], %s1663
        // Predicated region
        $region85: #{tpu_custom_call.1} parent=47 // pred_check
          %p1665 = pneg %p225
        $region86: #{tpu_custom_call.1} parent=47 // pred_check_branch
          %1667 = sbr.rel (%p1665) target = $region88
        $region87: #{tpu_custom_call.1} parent=47 // pred_region
          %s1669 = ssub.s32 128, 128
          %1670 = vsyncadd %s1661, %s1669
          %s1671 = smul.addr %s33, 128
          %s1672 = scalar_lea.hbm %s7, %s1671
          %s1674 = sshll.u32 %s1664, 4
          %s1675 = int_to_ptr.vmem [resolvable:$true] %s1674
          %1677 = dma.vmem_to_hbm [thread:$0]  %s1675, 128, %s1672, %s1661
        $region88: #{tpu_custom_call.1} parent=47 // pred_fallthru
          _
      $region48: #{tpu_custom_call.1} parent=5 // pred_fallthru
        _
      %p1678 = scmp.le.s32.totalorder 2, %s24
      // Predicated region
      $region89: #{tpu_custom_call.1} parent=5 // pred_check
        %p1679 = pneg %p1678
      $region90: #{tpu_custom_call.1} parent=5 // pred_check_branch
        %1681 = sbr.rel (%p1679) target = $region92
      $region91: #{tpu_custom_call.1} parent=5 // pred_region
        %s1682 = ssub.s32 %s24, 2
        // Predicated region
        $region93: #{tpu_custom_call.1} parent=91 // pred_check
          %p1683 = pneg %p231
        $region94: #{tpu_custom_call.1} parent=91 // pred_check_branch
          %1685 = sbr.rel (%p1683) target = $region96
        $region95: #{tpu_custom_call.1} parent=91 // pred_region
          %s1686 = sand.u32 %s216, 1
          %s1687 = scalar_lea.sflag [#allocation7], %s1686
          %s1688 = sand.u32 %s216, 1
          %s1689 = smul.addr %s1688, 8
          %s1690 = scalar_lea.vmem [#allocation17], %s1689
          %1691 = dma.done %s1687, 128
        $region96: #{tpu_custom_call.1} parent=91 // pred_fallthru
          _
      $region92: #{tpu_custom_call.1} parent=5 // pred_fallthru
        _
    $region6: #{tpu_custom_call.1} parent=1 // loop_footer
      %s28 = sadd.s32 1, %s24
    $region7: #{tpu_custom_call.1} parent=1 // loop_footer_branch
      %23 = sbr.rel target = $region3
    $region8: #{tpu_custom_call.1} parent=1 // loop_exit
      _
    %1692 = vsyncpa [#allocation6], 1
    %s1693 = scalar_lea.sflag [#allocation6], 1
    %1694 = vsyncpa %s1693, 1
    %1695 = vsyncpa [#allocation9], 1
    %s1696 = scalar_lea.sflag [#allocation9], 1
    %1697 = vsyncpa %s1696, 1
    %1698 = vsyncpa [#allocation12], 1
    %1699 = vsyncpa [#allocation15], 1
    %1700 = vsyncpa [#allocation7], 1
    %s1701 = scalar_lea.sflag [#allocation7], 1
    %1702 = vsyncpa %s1701, 1

</llo_original>
